<compile_context>
chip_gen: v6e
topology: v6e:2x2x1
jax: 0.10.0
libtpu: 0.0.40
codegen_flags: <defaults>
</compile_context>

<pallas_src>
import functools

import jax
import jax.numpy as jnp
from jax.experimental import pallas as pl
from jax.experimental.pallas import tpu as pltpu


def _round_up(x, m):
    return ((x + m - 1) // m) * m


# ---------------------------------------------------------------------------
# Fused forward kernel (one batch tile per grid step; everything else resident)
# ---------------------------------------------------------------------------
def _fused_forward_kernel(oh_ref, w1_ref, b1_ref, w2_ref, b2_ref,
                          wr1_ref, br1_ref, wr2_ref, br2_ref,
                          wo_ref, bo_ref, o_ref, *, act_dtype):
    f32 = jnp.float32
    mm_dtype = w1_ref.dtype          # weights arrive pre-cast to the matmul dtype

    # ---- fc1: single matmul on the int8 one-hot (cast once) ---------------
    oh = oh_ref[...].astype(mm_dtype)                       # (TM, S*depth)
    x = jnp.dot(oh, w1_ref[...], preferred_element_type=f32) + b1_ref[...]
    x = jnp.maximum(x, 0.0).astype(act_dtype)               # (TM, H)

    # ---- fc2 + ReLU --------------------------------------------------------
    x = jnp.dot(x.astype(mm_dtype), w2_ref[...],
                preferred_element_type=f32) + b2_ref[...]
    x = jnp.maximum(x, 0.0).astype(act_dtype)               # (TM, D)

    # ---- residual blocks (statically unrolled, weights resident) ----------
    for n in range(wr1_ref.shape[0]):
        res = x
        h = jnp.dot(x.astype(mm_dtype), wr1_ref[n],
                    preferred_element_type=f32) + br1_ref[n]
        h = jnp.maximum(h, 0.0).astype(act_dtype)
        y = jnp.dot(h.astype(mm_dtype), wr2_ref[n],
                    preferred_element_type=f32) + br2_ref[n]
        x = jnp.maximum(y + res.astype(f32), 0.0).astype(act_dtype)

    # ---- fc_out: lane-dense (out_dim, TM) result ---------------------------
    out = jax.lax.dot_general(
        wo_ref[...], x.astype(mm_dtype),
        dimension_numbers=(((1,), (1,)), ((), ())),
        preferred_element_type=f32) + bo_ref[...]           # (out_dim, TM)
    o_ref[...] = out.astype(o_ref.dtype)


# ---------------------------------------------------------------------------
# Wrapper: batch tiling + weight prep + pallas_call
# ---------------------------------------------------------------------------
def _choose_tile(batch, block_batch):
    # TM is a multiple of 128 (lane-dense output stores, int8 sublane packing).
    tm = min(_round_up(block_batch, 128), _round_up(batch, 128))
    if batch >= 256:
        # Ensure >= 2 grid steps so the "parallel" batch axis can be sharded
        # across the 2 TensorCores on v7x.
        tm = min(tm, _round_up(pl.cdiv(batch, 2), 128))
    return max(tm, 128)


def resnet_forward(x_states, params, *, state_dim, one_hot_depth,
                   block_batch=512, matmul_dtype=jnp.bfloat16,
                   act_dtype=jnp.float32):
    """Fused forward pass.  matmul_dtype: MXU operand dtype (bf16 default).
    act_dtype: dtype activations are carried in between layers (f32 default;
    use bf16 on v6e/v7x to halve vreg pressure; keep f32 on v5e)."""
    if one_hot_depth <= 0:
        raise NotImplementedError("fused kernel only supports one_hot_depth > 0")

    B = x_states.shape[0]
    S = state_dim
    IN = S * one_hot_depth

    w1, b1 = params["fc1"]              # (IN, H), (1, H)
    H = w1.shape[1]
    w2, b2 = params["fc2"]              # (H, D), (1, D)
    D = w2.shape[1]
    w_out, b_out = params["fc_out"]     # (D, out_dim), (1, out_dim)
    out_dim = w_out.shape[1]
    NB = len(params["blocks"])

    # Pre-cast matmul operands to the MXU dtype once in the wrapper (resident
    # weights are then never re-cast per grid step inside the kernel).
    w1c = w1.astype(matmul_dtype)
    w2c = w2.astype(matmul_dtype)
    wr1 = jnp.stack([blk[0] for blk in params["blocks"]]).astype(matmul_dtype)
    br1 = jnp.stack([blk[1] for blk in params["blocks"]])                 # f32
    wr2 = jnp.stack([blk[2] for blk in params["blocks"]]).astype(matmul_dtype)
    br2 = jnp.stack([blk[3] for blk in params["blocks"]])                 # f32
    wo = w_out.T.astype(matmul_dtype)                                     # (out_dim, D)
    bo = b_out.T                                                          # (out_dim, 1) f32

    # One-hot built in the wrapper as int8: (B, S*depth) = same bytes/row as
    # the int32 states, and fc1 becomes a single matmul.
    oh = jax.nn.one_hot(x_states.astype(jnp.int32), one_hot_depth,
                        dtype=jnp.int8).reshape(B, IN)

    # Batch tiling (pad to a tile multiple; padded rows are all-zero one-hots
    # and are sliced off after the call).
    TM = _choose_tile(B, block_batch)
    Bp = _round_up(B, TM)
    if Bp != B:
        oh = jnp.pad(oh, ((0, Bp - B), (0, 0)))

    def const_spec(a):
        zeros = (0,) * a.ndim
        return pl.BlockSpec(a.shape, lambda i, _z=zeros: _z)

    itemsize = jnp.dtype(matmul_dtype).itemsize
    weight_bytes = (w1c.size + w2c.size + wr1.size + wr2.size + wo.size) * itemsize \
        + (b1.size + b2.size + br1.size + br2.size + bo.size) * 4
    cost = pl.CostEstimate(
        flops=2 * Bp * (IN * H + H * D + 2 * NB * D * D + D * out_dim),
        transcendentals=0,
        bytes_accessed=int(Bp * IN + weight_bytes + Bp * out_dim * 4))

    grid = (Bp // TM,)
    out_t = pl.pallas_call(
        functools.partial(_fused_forward_kernel, act_dtype=act_dtype),
        out_shape=jax.ShapeDtypeStruct((out_dim, Bp), jnp.float32),
        grid=grid,
        in_specs=[pl.BlockSpec((TM, IN), lambda i: (i, 0)),    # one-hot (tiled)
                  const_spec(w1c), const_spec(b1),             # weights: resident
                  const_spec(w2c), const_spec(b2),
                  const_spec(wr1), const_spec(br1),
                  const_spec(wr2), const_spec(br2),
                  const_spec(wo), const_spec(bo)],
        out_specs=pl.BlockSpec((out_dim, TM), lambda i: (0, i)),   # lane-dense
        compiler_params=pltpu.CompilerParams(
            dimension_semantics=("parallel",)),                    # megacore on v7x
        cost_estimate=cost,
    )(oh, w1c, b1, w2c, b2, wr1, br1, wr2, br2, wo, bo)

    return out_t.T[:B]                                              # (B, out_dim)


# ---------------------------------------------------------------------------
# Parameter init (PyTorch-Linear-style U(-1/sqrt(fan_in), 1/sqrt(fan_in)))
# ---------------------------------------------------------------------------
def _init_linear(key, fan_in, fan_out):
    kw, kb = jax.random.split(key)
    bound = 1.0 / jnp.sqrt(jnp.float32(fan_in))
    w = jax.random.uniform(kw, (fan_in, fan_out), jnp.float32, -bound, bound)
    b = jax.random.uniform(kb, (1, fan_out), jnp.float32, -bound, bound)
    return w, b


def init_params(key, state_dim, one_hot_depth, h1_dim, resnet_dim,
                num_resnet_blocks, out_dim):
    in_dim = state_dim * one_hot_depth if one_hot_depth > 0 else state_dim
    keys = jax.random.split(key, 3 + 2 * num_resnet_blocks)
    params = {
        "fc1": _init_linear(keys[0], in_dim, h1_dim),
        "fc2": _init_linear(keys[1], h1_dim, resnet_dim),
        "fc_out": _init_linear(keys[2], resnet_dim, out_dim),
        "blocks": [],
    }
    for i in range(num_resnet_blocks):
        w1, b1 = _init_linear(keys[3 + 2 * i], resnet_dim, resnet_dim)
        w2, b2 = _init_linear(keys[4 + 2 * i], resnet_dim, resnet_dim)
        params["blocks"].append((w1, b1, w2, b2))
    return params


# ---------------------------------------------------------------------------
# Pure-JAX reference (for correctness checking)
# ---------------------------------------------------------------------------
def resnet_forward_ref(x_states, params, *, state_dim, one_hot_depth):
    if one_hot_depth > 0:
        x = jax.nn.one_hot(x_states.astype(jnp.int32), one_hot_depth,
                           dtype=jnp.float32)
        x = x.reshape(-1, state_dim * one_hot_depth)
    else:
        x = x_states.astype(jnp.float32)
    w, b = params["fc1"]
    x = jax.nn.relu(x @ w + b)
    w, b = params["fc2"]
    x = jax.nn.relu(x @ w + b)
    for (w1, b1, w2, b2) in params["blocks"]:
        res = x
        h = jax.nn.relu(x @ w1 + b1)
        x = jax.nn.relu(h @ w2 + b2 + res)
    w, b = params["fc_out"]
    return x @ w + b


# ---------------------------------------------------------------------------
if __name__ == "__main__":
    state_dim = 8
    one_hot_depth = 4
    h1_dim = 64
    resnet_dim = 128
    num_resnet_blocks = 2
    out_dim = 1
    batch = 200          # exercises batch padding and (with block_batch=128) a 2-step grid

    key = jax.random.PRNGKey(0)
    k_params, k_x = jax.random.split(key)

    params = init_params(k_params, state_dim, one_hot_depth, h1_dim,
                         resnet_dim, num_resnet_blocks, out_dim)

    # integer state vectors (Rubik's-cube-like), values in [0, one_hot_depth)
    x_states = jax.random.randint(k_x, (batch, state_dim), 0, one_hot_depth,
                                  dtype=jnp.int32)

    ref = resnet_forward_ref(x_states, params, state_dim=state_dim,
                             one_hot_depth=one_hot_depth)
    ref = jax.block_until_ready(ref)

    # 1) f32 operand path (strict check), tiled grid (block_batch=128 -> 2 steps).
    out_f32 = resnet_forward(x_states, params, state_dim=state_dim,
                             one_hot_depth=one_hot_depth, block_batch=128,
                             matmul_dtype=jnp.float32, act_dtype=jnp.float32)
    out_f32 = jax.block_until_ready(out_f32)
    assert out_f32.shape == (batch, out_dim), out_f32.shape
    assert jnp.allclose(out_f32, ref, atol=1e-3, rtol=1e-3), \
        f"f32 mismatch: max abs diff {jnp.max(jnp.abs(out_f32 - ref))}"

    # 2) Default path: bf16 matmul operands (f32 accumulation / elementwise).
    out_bf16 = resnet_forward(x_states, params, state_dim=state_dim,
                              one_hot_depth=one_hot_depth)
    out_bf16 = jax.block_until_ready(out_bf16)
    assert out_bf16.shape == (batch, out_dim), out_bf16.shape
    assert jnp.allclose(out_bf16, ref, atol=1e-1, rtol=1e-1), \
        f"bf16 mismatch: max abs diff {jnp.max(jnp.abs(out_bf16 - ref))}"

    # 3) v6e/v7x-oriented path: bf16 operands + bf16 activation carry.
    out_bf16a = resnet_forward(x_states, params, state_dim=state_dim,
                               one_hot_depth=one_hot_depth,
                               matmul_dtype=jnp.bfloat16,
                               act_dtype=jnp.bfloat16)
    out_bf16a = jax.block_until_ready(out_bf16a)
    assert out_bf16a.shape == (batch, out_dim), out_bf16a.shape
    assert jnp.allclose(out_bf16a, ref, atol=2e-1, rtol=2e-1), \
        f"bf16-act mismatch: max abs diff {jnp.max(jnp.abs(out_bf16a - ref))}"

    print("KERNEL_OK")
</pallas_src>

<mosaic_0001>
module attributes {stable_mosaic.version = 11 : i64} {
  func.func @_fused_forward_kernel(%arg0: i32, %arg1: memref<128x32xi8, #tpu.memory_space<vmem>>, %arg2: memref<32x64xf32, #tpu.memory_space<vmem>>, %arg3: memref<1x64xf32, #tpu.memory_space<vmem>>, %arg4: memref<64x128xf32, #tpu.memory_space<vmem>>, %arg5: memref<1x128xf32, #tpu.memory_space<vmem>>, %arg6: memref<2x128x128xf32, #tpu.memory_space<vmem>>, %arg7: memref<2x1x128xf32, #tpu.memory_space<vmem>>, %arg8: memref<2x128x128xf32, #tpu.memory_space<vmem>>, %arg9: memref<2x1x128xf32, #tpu.memory_space<vmem>>, %arg10: memref<1x128xf32, #tpu.memory_space<vmem>>, %arg11: memref<1x1xf32, #tpu.memory_space<vmem>>, %arg12: memref<1x128xf32, #tpu.memory_space<vmem>>) attributes {dimension_semantics = [#tpu.dimension_semantics<parallel>], iteration_bounds = array<i64: 2>, scalar_prefetch = 0 : i64, scratch_operands = 0 : i64, tpu.core_type = #tpu.core_type<tc>, window_params = [{transform_indices = @transform_0, window_bounds = array<i64: 128, 32>}, {pipeline_mode = #tpu.pipeline_mode<synchronous>, transform_indices = @transform_1, window_bounds = array<i64: 32, 64>}, {pipeline_mode = #tpu.pipeline_mode<synchronous>, transform_indices = @transform_2, window_bounds = array<i64: 1, 64>}, {pipeline_mode = #tpu.pipeline_mode<synchronous>, transform_indices = @transform_3, window_bounds = array<i64: 64, 128>}, {pipeline_mode = #tpu.pipeline_mode<synchronous>, transform_indices = @transform_4, window_bounds = array<i64: 1, 128>}, {pipeline_mode = #tpu.pipeline_mode<synchronous>, transform_indices = @transform_5, window_bounds = array<i64: 2, 128, 128>}, {pipeline_mode = #tpu.pipeline_mode<synchronous>, transform_indices = @transform_6, window_bounds = array<i64: 2, 1, 128>}, {pipeline_mode = #tpu.pipeline_mode<synchronous>, transform_indices = @transform_7, window_bounds = array<i64: 2, 128, 128>}, {pipeline_mode = #tpu.pipeline_mode<synchronous>, transform_indices = @transform_8, window_bounds = array<i64: 2, 1, 128>}, {pipeline_mode = #tpu.pipeline_mode<synchronous>, transform_indices = @transform_9, window_bounds = array<i64: 1, 128>}, {pipeline_mode = #tpu.pipeline_mode<synchronous>, transform_indices = @transform_10, window_bounds = array<i64: 1, 1>}, {transform_indices = @transform_11, window_bounds = array<i64: 1, 128>}]} {
    %c0 = arith.constant 0 : index
    %c0_0 = arith.constant 0 : index
    %0 = vector.load %arg1[%c0, %c0_0] : memref<128x32xi8, #tpu.memory_space<vmem>>, vector<128x32xi8>
    %1 = arith.sitofp %0 : vector<128x32xi8> to vector<128x32xf32>
    %c0_1 = arith.constant 0 : index
    %c0_2 = arith.constant 0 : index
    %2 = vector.load %arg2[%c0_1, %c0_2] : memref<32x64xf32, #tpu.memory_space<vmem>>, vector<32x64xf32>
    %cst = arith.constant dense<0.000000e+00> : vector<128x64xf32>
    %3 = tpu.matmul %1, %2, %cst {dimension_numbers = #tpu.dot_dimension_numbers<[1], [0], [0], [1], [0, 0, 1, 1], [], []>} : vector<128x32xf32>, vector<32x64xf32>, vector<128x64xf32> -> vector<128x64xf32>
    %c0_3 = arith.constant 0 : index
    %c0_4 = arith.constant 0 : index
    %4 = vector.load %arg3[%c0_3, %c0_4] : memref<1x64xf32, #tpu.memory_space<vmem>>, vector<1x64xf32>
    %5 = vector.broadcast %4 : vector<1x64xf32> to vector<128x64xf32>
    %6 = arith.addf %3, %5 : vector<128x64xf32>
    %cst_5 = arith.constant 0.000000e+00 : f32
    %7 = vector.broadcast %cst_5 : f32 to vector<128x64xf32>
    %8 = arith.maximumf %6, %7 : vector<128x64xf32>
    %c0_6 = arith.constant 0 : index
    %c0_7 = arith.constant 0 : index
    %9 = vector.load %arg4[%c0_6, %c0_7] : memref<64x128xf32, #tpu.memory_space<vmem>>, vector<64x128xf32>
    %cst_8 = arith.constant dense<0.000000e+00> : vector<128x128xf32>
    %10 = tpu.matmul %8, %9, %cst_8 {dimension_numbers = #tpu.dot_dimension_numbers<[1], [0], [0], [1], [0, 0, 1, 1], [], []>} : vector<128x64xf32>, vector<64x128xf32>, vector<128x128xf32> -> vector<128x128xf32>
    %c0_9 = arith.constant 0 : index
    %c0_10 = arith.constant 0 : index
    %11 = vector.load %arg5[%c0_9, %c0_10] : memref<1x128xf32, #tpu.memory_space<vmem>>, vector<1x128xf32>
    %12 = vector.broadcast %11 : vector<1x128xf32> to vector<128x128xf32>
    %13 = arith.addf %10, %12 : vector<128x128xf32>
    %cst_11 = arith.constant 0.000000e+00 : f32
    %14 = vector.broadcast %cst_11 : f32 to vector<128x128xf32>
    %15 = arith.maximumf %13, %14 : vector<128x128xf32>
    %c0_12 = arith.constant 0 : index
    %c0_13 = arith.constant 0 : index
    %c0_14 = arith.constant 0 : index
    %16 = vector.load %arg6[%c0_12, %c0_13, %c0_14] : memref<2x128x128xf32, #tpu.memory_space<vmem>>, vector<1x128x128xf32>
    %17 = vector.shape_cast %16 : vector<1x128x128xf32> to vector<128x128xf32>
    %cst_15 = arith.constant dense<0.000000e+00> : vector<128x128xf32>
    %18 = tpu.matmul %15, %17, %cst_15 {dimension_numbers = #tpu.dot_dimension_numbers<[1], [0], [0], [1], [0, 0, 1, 1], [], []>} : vector<128x128xf32>, vector<128x128xf32>, vector<128x128xf32> -> vector<128x128xf32>
    %c0_16 = arith.constant 0 : index
    %c0_17 = arith.constant 0 : index
    %c0_18 = arith.constant 0 : index
    %19 = vector.load %arg7[%c0_16, %c0_17, %c0_18] : memref<2x1x128xf32, #tpu.memory_space<vmem>>, vector<1x1x128xf32>
    %20 = vector.shape_cast %19 : vector<1x1x128xf32> to vector<1x128xf32>
    %21 = vector.broadcast %20 : vector<1x128xf32> to vector<128x128xf32>
    %22 = arith.addf %18, %21 : vector<128x128xf32>
    %cst_19 = arith.constant 0.000000e+00 : f32
    %23 = vector.broadcast %cst_19 : f32 to vector<128x128xf32>
    %24 = arith.maximumf %22, %23 : vector<128x128xf32>
    %c0_20 = arith.constant 0 : index
    %c0_21 = arith.constant 0 : index
    %c0_22 = arith.constant 0 : index
    %25 = vector.load %arg8[%c0_20, %c0_21, %c0_22] : memref<2x128x128xf32, #tpu.memory_space<vmem>>, vector<1x128x128xf32>
    %26 = vector.shape_cast %25 : vector<1x128x128xf32> to vector<128x128xf32>
    %cst_23 = arith.constant dense<0.000000e+00> : vector<128x128xf32>
    %27 = tpu.matmul %24, %26, %cst_23 {dimension_numbers = #tpu.dot_dimension_numbers<[1], [0], [0], [1], [0, 0, 1, 1], [], []>} : vector<128x128xf32>, vector<128x128xf32>, vector<128x128xf32> -> vector<128x128xf32>
    %c0_24 = arith.constant 0 : index
    %c0_25 = arith.constant 0 : index
    %c0_26 = arith.constant 0 : index
    %28 = vector.load %arg9[%c0_24, %c0_25, %c0_26] : memref<2x1x128xf32, #tpu.memory_space<vmem>>, vector<1x1x128xf32>
    %29 = vector.shape_cast %28 : vector<1x1x128xf32> to vector<1x128xf32>
    %30 = vector.broadcast %29 : vector<1x128xf32> to vector<128x128xf32>
    %31 = arith.addf %27, %30 : vector<128x128xf32>
    %32 = arith.addf %31, %15 : vector<128x128xf32>
    %cst_27 = arith.constant 0.000000e+00 : f32
    %33 = vector.broadcast %cst_27 : f32 to vector<128x128xf32>
    %34 = arith.maximumf %32, %33 : vector<128x128xf32>
    %c1 = arith.constant 1 : index
    %c0_28 = arith.constant 0 : index
    %c0_29 = arith.constant 0 : index
    %35 = vector.load %arg6[%c1, %c0_28, %c0_29] : memref<2x128x128xf32, #tpu.memory_space<vmem>>, vector<1x128x128xf32>
    %36 = vector.shape_cast %35 : vector<1x128x128xf32> to vector<128x128xf32>
    %cst_30 = arith.constant dense<0.000000e+00> : vector<128x128xf32>
    %37 = tpu.matmul %34, %36, %cst_30 {dimension_numbers = #tpu.dot_dimension_numbers<[1], [0], [0], [1], [0, 0, 1, 1], [], []>} : vector<128x128xf32>, vector<128x128xf32>, vector<128x128xf32> -> vector<128x128xf32>
    %c1_31 = arith.constant 1 : index
    %c0_32 = arith.constant 0 : index
    %c0_33 = arith.constant 0 : index
    %38 = vector.load %arg7[%c1_31, %c0_32, %c0_33] : memref<2x1x128xf32, #tpu.memory_space<vmem>>, vector<1x1x128xf32>
    %39 = vector.shape_cast %38 : vector<1x1x128xf32> to vector<1x128xf32>
    %40 = vector.broadcast %39 : vector<1x128xf32> to vector<128x128xf32>
    %41 = arith.addf %37, %40 : vector<128x128xf32>
    %cst_34 = arith.constant 0.000000e+00 : f32
    %42 = vector.broadcast %cst_34 : f32 to vector<128x128xf32>
    %43 = arith.maximumf %41, %42 : vector<128x128xf32>
    %c1_35 = arith.constant 1 : index
    %c0_36 = arith.constant 0 : index
    %c0_37 = arith.constant 0 : index
    %44 = vector.load %arg8[%c1_35, %c0_36, %c0_37] : memref<2x128x128xf32, #tpu.memory_space<vmem>>, vector<1x128x128xf32>
    %45 = vector.shape_cast %44 : vector<1x128x128xf32> to vector<128x128xf32>
    %cst_38 = arith.constant dense<0.000000e+00> : vector<128x128xf32>
    %46 = tpu.matmul %43, %45, %cst_38 {dimension_numbers = #tpu.dot_dimension_numbers<[1], [0], [0], [1], [0, 0, 1, 1], [], []>} : vector<128x128xf32>, vector<128x128xf32>, vector<128x128xf32> -> vector<128x128xf32>
    %c1_39 = arith.constant 1 : index
    %c0_40 = arith.constant 0 : index
    %c0_41 = arith.constant 0 : index
    %47 = vector.load %arg9[%c1_39, %c0_40, %c0_41] : memref<2x1x128xf32, #tpu.memory_space<vmem>>, vector<1x1x128xf32>
    %48 = vector.shape_cast %47 : vector<1x1x128xf32> to vector<1x128xf32>
    %49 = vector.broadcast %48 : vector<1x128xf32> to vector<128x128xf32>
    %50 = arith.addf %46, %49 : vector<128x128xf32>
    %51 = arith.addf %50, %34 : vector<128x128xf32>
    %cst_42 = arith.constant 0.000000e+00 : f32
    %52 = vector.broadcast %cst_42 : f32 to vector<128x128xf32>
    %53 = arith.maximumf %51, %52 : vector<128x128xf32>
    %c0_43 = arith.constant 0 : index
    %c0_44 = arith.constant 0 : index
    %54 = vector.load %arg10[%c0_43, %c0_44] : memref<1x128xf32, #tpu.memory_space<vmem>>, vector<1x128xf32>
    %cst_45 = arith.constant dense<0.000000e+00> : vector<1x128xf32>
    %55 = tpu.matmul %54, %53, %cst_45 {dimension_numbers = #tpu.dot_dimension_numbers<[1], [1], [0], [0], [0, 0, 1, 0], [], []>} : vector<1x128xf32>, vector<128x128xf32>, vector<1x128xf32> -> vector<1x128xf32>
    %c0_46 = arith.constant 0 : index
    %c0_47 = arith.constant 0 : index
    %56 = vector.load %arg11[%c0_46, %c0_47] : memref<1x1xf32, #tpu.memory_space<vmem>>, vector<1x1xf32>
    %57 = vector.broadcast %56 : vector<1x1xf32> to vector<1x128xf32>
    %58 = arith.addf %55, %57 : vector<1x128xf32>
    %c0_48 = arith.constant 0 : index
    %c0_49 = arith.constant 0 : index
    %59 = vector.load %arg12[%c0_48, %c0_49] : memref<1x128xf32, #tpu.memory_space<vmem>>, vector<1x128xf32>
    tpu.vector_store %arg12[%c0_48, %c0_49], %58 {strides = array<i32>} : memref<1x128xf32, #tpu.memory_space<vmem>>, vector<1x128xf32>,
    return
  }
  func.func @transform_0(%arg0: i32) -> (i32, i32) {
    %c0_i32 = arith.constant 0 : i32
    %c0_i32_0 = arith.constant 0 : i32
    return %arg0, %c0_i32 : i32, i32
  }
  func.func @transform_1(%arg0: i32) -> (i32, i32) {
    %c0_i32 = arith.constant 0 : i32
    %c0_i32_0 = arith.constant 0 : i32
    %c0_i32_1 = arith.constant 0 : i32
    return %c0_i32, %c0_i32_0 : i32, i32
  }
  func.func @transform_2(%arg0: i32) -> (i32, i32) {
    %c0_i32 = arith.constant 0 : i32
    %c0_i32_0 = arith.constant 0 : i32
    %c0_i32_1 = arith.constant 0 : i32
    return %c0_i32, %c0_i32_0 : i32, i32
  }
  func.func @transform_3(%arg0: i32) -> (i32, i32) {
    %c0_i32 = arith.constant 0 : i32
    %c0_i32_0 = arith.constant 0 : i32
    %c0_i32_1 = arith.constant 0 : i32
    return %c0_i32, %c0_i32_0 : i32, i32
  }
  func.func @transform_4(%arg0: i32) -> (i32, i32) {
    %c0_i32 = arith.constant 0 : i32
    %c0_i32_0 = arith.constant 0 : i32
    %c0_i32_1 = arith.constant 0 : i32
    return %c0_i32, %c0_i32_0 : i32, i32
  }
  func.func @transform_5(%arg0: i32) -> (i32, i32, i32) {
    %c0_i32 = arith.constant 0 : i32
    %c0_i32_0 = arith.constant 0 : i32
    %c0_i32_1 = arith.constant 0 : i32
    %c0_i32_2 = arith.constant 0 : i32
    return %c0_i32, %c0_i32_0, %c0_i32_1 : i32, i32, i32
  }
  func.func @transform_6(%arg0: i32) -> (i32, i32, i32) {
    %c0_i32 = arith.constant 0 : i32
    %c0_i32_0 = arith.constant 0 : i32
    %c0_i32_1 = arith.constant 0 : i32
    %c0_i32_2 = arith.constant 0 : i32
    return %c0_i32, %c0_i32_0, %c0_i32_1 : i32, i32, i32
  }
  func.func @transform_7(%arg0: i32) -> (i32, i32, i32) {
    %c0_i32 = arith.constant 0 : i32
    %c0_i32_0 = arith.constant 0 : i32
    %c0_i32_1 = arith.constant 0 : i32
    %c0_i32_2 = arith.constant 0 : i32
    return %c0_i32, %c0_i32_0, %c0_i32_1 : i32, i32, i32
  }
  func.func @transform_8(%arg0: i32) -> (i32, i32, i32) {
    %c0_i32 = arith.constant 0 : i32
    %c0_i32_0 = arith.constant 0 : i32
    %c0_i32_1 = arith.constant 0 : i32
    %c0_i32_2 = arith.constant 0 : i32
    return %c0_i32, %c0_i32_0, %c0_i32_1 : i32, i32, i32
  }
  func.func @transform_9(%arg0: i32) -> (i32, i32) {
    %c0_i32 = arith.constant 0 : i32
    %c0_i32_0 = arith.constant 0 : i32
    %c0_i32_1 = arith.constant 0 : i32
    return %c0_i32, %c0_i32_0 : i32, i32
  }
  func.func @transform_10(%arg0: i32) -> (i32, i32) {
    %c0_i32 = arith.constant 0 : i32
    %c0_i32_0 = arith.constant 0 : i32
    %c0_i32_1 = arith.constant 0 : i32
    return %c0_i32, %c0_i32_0 : i32, i32
  }
  func.func @transform_11(%arg0: i32) -> (i32, i32) {
    %c0_i32 = arith.constant 0 : i32
    %c0_i32_0 = arith.constant 0 : i32
    return %c0_i32, %arg0 : i32, i32
  }
}

</mosaic_0001>

<llo_original>
// kernel: tpu_custom_call.1
$region0: #{tpu_custom_call.1}
  #allocation0 [shape = 'u32[]', space=smem, size = 0x4, offset = 0x4, fixed_abs, tag = 'smem constant byte address 0x4 - core index']
  #allocation1 [shape = 'u32[144,128]{1,0:T(1,128)}', space=vmem, size = 0x12000, scoped, tag = 'internal scratch']
  #allocation2 [shape = 'f32[1,1]{1,0:T(1,128)S(1)}', space=vmem, size = 0x200, scoped, tag = 'scoped memory for tpu_custom_call.1']
  %s0 = inlined_call_operand.vmem [shape: s8[256,32], index: 0, kind: input, shape index: {}]
  %s1 = inlined_call_operand.hbm [shape: f32[32,64], index: 1, kind: input, shape index: {}]
  %s2 = inlined_call_operand.vmem [shape: f32[1,64], index: 2, kind: input, shape index: {}]
  %s3 = inlined_call_operand.vmem [shape: f32[64,128], index: 3, kind: input, shape index: {}]
  %s4 = inlined_call_operand.vmem [shape: f32[1,128], index: 4, kind: input, shape index: {}]
  %s5 = inlined_call_operand.hbm [shape: f32[2,128,128], index: 5, kind: input, shape index: {}]
  %s6 = inlined_call_operand.vmem [shape: f32[2,1,128], index: 6, kind: input, shape index: {}]
  %s7 = inlined_call_operand.hbm [shape: f32[2,128,128], index: 7, kind: input, shape index: {}]
  %s8 = inlined_call_operand.vmem [shape: f32[2,1,128], index: 8, kind: input, shape index: {}]
  %s9 = inlined_call_operand.vmem [shape: f32[1,128], index: 9, kind: input, shape index: {}]
  %s10 = inlined_call_operand.<no memory space> [shape: f32[1,1], index: 10, kind: input, shape index: {}]
  %s11 = inlined_call_operand.hbm [shape: f32[1,256], index: 11, kind: output, shape index: {}]
  %s12 = sld [smem:[#allocation0]]
  $region89: #{tpu_custom_call.1} parent=0
    _
  %s14 = ssub.s32 1, %s12
  %s15 = scalar_select 0, %s14, %s12
  %v16 = vstv %s10
  %17 = vst [vmem:[#allocation2] sm:$0x1] %v16
  $region1: #{tpu_custom_call.1} parent=0
    #allocation3 [shape = 'u8[16384]{0}', space=vmem, size = 0x4000, scoped, tag = 'input window, operand 1, single buffered']
    #allocation4 [shape = 's32[2]{0}', space=sflag, size = 0x8, scoped, tag = 'scoped memory for tpu_custom_call.1']
    #allocation5 [shape = 's32[2]{0}', space=sflag, size = 0x8, scoped, tag = 'scoped memory for tpu_custom_call.1']
    #allocation6 [shape = 'u8[131072]{0}', space=vmem, size = 0x20000, scoped, tag = 'input window, operand 5, single buffered']
    #allocation7 [shape = 's32[1]{0}', space=sflag, size = 0x4, scoped, tag = 'scoped memory for tpu_custom_call.1']
    #allocation8 [shape = 'u8[131072]{0}', space=vmem, size = 0x20000, scoped, tag = 'input window, operand 7, single buffered']
    #allocation9 [shape = 'u8[1024]{0}', space=vmem, size = 0x400, scoped, tag = 'output window, operand 0']
    %18 = vsyncpa [#allocation4], 0
    %19 = vsyncpa [#allocation7], 0
    %20 = vsyncpa [#allocation5], 0
    %s21 = scalar_lea.sflag [#allocation5], 1
    %22 = vsyncpa %s21, 0
    loop: start=0, step=1, limit=4
    $region2: #{tpu_custom_call.1} parent=1 // loop_pre_header
      _
    $region3: #{tpu_custom_call.1} parent=1 // loop_header
      %s24 = sphi 0, %s28
      %p25 = scmp.ge.s32.totalorder %s24, 4
      %s34 = sphi 0, %s36
      %s37 = sphi 0, %s34
      %s38 = sphi 0, %s37
      %s54 = sphi 0, %s38
      %s58 = sphi 0, %s58
      %s60 = sphi 0, %s58
      %s61 = sphi 0, %s60
      %s75 = sphi 0, %s61
      %s79 = sphi 0, %s79
      %s81 = sphi 0, %s79
      %s82 = sphi 0, %s81
      %s96 = sphi 0, %s82
      %s100 = sphi 0, %s100
      %s102 = sphi 0, %s100
      %s103 = sphi 0, %s102
      %s117 = sphi 0, %s103
      %s121 = sphi 0, %s121
      %s123 = sphi 0, %s121
      %s124 = sphi 0, %s123
      %s138 = sphi 0, %s124
      %s142 = sphi 0, %s142
      %s144 = sphi 0, %s142
      %s145 = sphi 0, %s144
      %s159 = sphi 0, %s145
      %s163 = sphi 0, %s163
      %s165 = sphi 0, %s163
      %s166 = sphi 0, %s165
      %s180 = sphi 0, %s166
      %s184 = sphi 0, %s184
      %s186 = sphi 0, %s184
      %s187 = sphi 0, %s186
      %s201 = sphi 0, %s187
      %s205 = sphi 0, %s205
      %s207 = sphi 0, %s205
      %s208 = sphi 0, %s207
      %s222 = sphi 0, %s208
      %s226 = sphi 0, %s226
      %s228 = sphi 0, %s226
      %s229 = sphi 0, %s228
      %s243 = sphi 0, %s229
      %s247 = sphi 0, %s247
      %s249 = sphi 0, %s247
      %s250 = sphi 0, %s249
      %s264 = sphi 0, %s250
      %s270 = sphi 0, %s272
      %s273 = sphi 0, %s270
      %s274 = sphi 0, %s273
      %s290 = sphi 0, %s274
    $region4: #{tpu_custom_call.1} parent=1 // loop_header_branch
      %27 = sbr.rel (%p25) target = $region8
    $region5: #{tpu_custom_call.1} parent=1 // loop_body
      %s29 = ssub.s32 %s24, 1
      %s30 = ssub.s32 %s24, 2
      %s31 = sadd.s32 %s24, 1
      %s32 = ssub.s32 %s24, %s31
      %p33 = scmp.eq.s32.totalorder %s32, 0
      %s35 = sadd.s32 %s34, 1
      %s36 = scalar_select %p33, %s34, %s35
      %p39 = pneg %p33
      %p40 = scmp.eq.s32.totalorder %s24, 1
      %p41 = por %p39, %p40
      %p42 = scmp.ne.s32.totalorder %s34, %s37
      %p43 = scmp.eq.s32.totalorder %s24, 0
      %p44 = por %p42, %p43
      %p45 = scmp.ne.s32.totalorder %s34, %s37
      %p46 = scmp.eq.s32.totalorder %s29, 1
      %p47 = por %p45, %p46
      %p48 = scmp.ne.s32.totalorder %s37, %s38
      %p49 = scmp.eq.s32.totalorder %s29, 0
      %p50 = por %p48, %p49
      %p51 = scmp.ne.s32.totalorder %s37, %s38
      %p52 = scmp.eq.s32.totalorder %s30, 1
      %p53 = por %p51, %p52
      %p55 = scmp.ne.s32.totalorder %s38, %s54
      %p56 = scmp.eq.s32.totalorder %s30, 0
      %p57 = por %p55, %p56
      %s59 = sadd.s32 %s58, 1
      %p62 = scmp.eq.s32.totalorder %s24, 1
      %p63 = scmp.ne.s32.totalorder %s58, %s60
      %p64 = scmp.eq.s32.totalorder %s24, 0
      %p65 = por %p63, %p64
      %p66 = scmp.ne.s32.totalorder %s58, %s60
      %p67 = scmp.eq.s32.totalorder %s29, 1
      %p68 = por %p66, %p67
      %p69 = scmp.ne.s32.totalorder %s60, %s61
      %p70 = scmp.eq.s32.totalorder %s29, 0
      %p71 = por %p69, %p70
      %p72 = scmp.ne.s32.totalorder %s60, %s61
      %p73 = scmp.eq.s32.totalorder %s30, 1
      %p74 = por %p72, %p73
      %p76 = scmp.ne.s32.totalorder %s61, %s75
      %p77 = scmp.eq.s32.totalorder %s30, 0
      %p78 = por %p76, %p77
      %s80 = sadd.s32 %s79, 1
      %p83 = scmp.eq.s32.totalorder %s24, 1
      %p84 = scmp.ne.s32.totalorder %s79, %s81
      %p85 = scmp.eq.s32.totalorder %s24, 0
      %p86 = por %p84, %p85
      %p87 = scmp.ne.s32.totalorder %s79, %s81
      %p88 = scmp.eq.s32.totalorder %s29, 1
      %p89 = por %p87, %p88
      %p90 = scmp.ne.s32.totalorder %s81, %s82
      %p91 = scmp.eq.s32.totalorder %s29, 0
      %p92 = por %p90, %p91
      %p93 = scmp.ne.s32.totalorder %s81, %s82
      %p94 = scmp.eq.s32.totalorder %s30, 1
      %p95 = por %p93, %p94
      %p97 = scmp.ne.s32.totalorder %s82, %s96
      %p98 = scmp.eq.s32.totalorder %s30, 0
      %p99 = por %p97, %p98
      %s101 = sadd.s32 %s100, 1
      %p104 = scmp.eq.s32.totalorder %s24, 1
      %p105 = scmp.ne.s32.totalorder %s100, %s102
      %p106 = scmp.eq.s32.totalorder %s24, 0
      %p107 = por %p105, %p106
      %p108 = scmp.ne.s32.totalorder %s100, %s102
      %p109 = scmp.eq.s32.totalorder %s29, 1
      %p110 = por %p108, %p109
      %p111 = scmp.ne.s32.totalorder %s102, %s103
      %p112 = scmp.eq.s32.totalorder %s29, 0
      %p113 = por %p111, %p112
      %p114 = scmp.ne.s32.totalorder %s102, %s103
      %p115 = scmp.eq.s32.totalorder %s30, 1
      %p116 = por %p114, %p115
      %p118 = scmp.ne.s32.totalorder %s103, %s117
      %p119 = scmp.eq.s32.totalorder %s30, 0
      %p120 = por %p118, %p119
      %s122 = sadd.s32 %s121, 1
      %p125 = scmp.eq.s32.totalorder %s24, 1
      %p126 = scmp.ne.s32.totalorder %s121, %s123
      %p127 = scmp.eq.s32.totalorder %s24, 0
      %p128 = por %p126, %p127
      %p129 = scmp.ne.s32.totalorder %s121, %s123
      %p130 = scmp.eq.s32.totalorder %s29, 1
      %p131 = por %p129, %p130
      %p132 = scmp.ne.s32.totalorder %s123, %s124
      %p133 = scmp.eq.s32.totalorder %s29, 0
      %p134 = por %p132, %p133
      %p135 = scmp.ne.s32.totalorder %s123, %s124
      %p136 = scmp.eq.s32.totalorder %s30, 1
      %p137 = por %p135, %p136
      %p139 = scmp.ne.s32.totalorder %s124, %s138
      %p140 = scmp.eq.s32.totalorder %s30, 0
      %p141 = por %p139, %p140
      %s143 = sadd.s32 %s142, 1
      %p146 = scmp.eq.s32.totalorder %s24, 1
      %p147 = scmp.ne.s32.totalorder %s142, %s144
      %p148 = scmp.eq.s32.totalorder %s24, 0
      %p149 = por %p147, %p148
      %p150 = scmp.ne.s32.totalorder %s142, %s144
      %p151 = scmp.eq.s32.totalorder %s29, 1
      %p152 = por %p150, %p151
      %p153 = scmp.ne.s32.totalorder %s144, %s145
      %p154 = scmp.eq.s32.totalorder %s29, 0
      %p155 = por %p153, %p154
      %p156 = scmp.ne.s32.totalorder %s144, %s145
      %p157 = scmp.eq.s32.totalorder %s30, 1
      %p158 = por %p156, %p157
      %p160 = scmp.ne.s32.totalorder %s145, %s159
      %p161 = scmp.eq.s32.totalorder %s30, 0
      %p162 = por %p160, %p161
      %s164 = sadd.s32 %s163, 1
      %p167 = scmp.eq.s32.totalorder %s24, 1
      %p168 = scmp.ne.s32.totalorder %s163, %s165
      %p169 = scmp.eq.s32.totalorder %s24, 0
      %p170 = por %p168, %p169
      %p171 = scmp.ne.s32.totalorder %s163, %s165
      %p172 = scmp.eq.s32.totalorder %s29, 1
      %p173 = por %p171, %p172
      %p174 = scmp.ne.s32.totalorder %s165, %s166
      %p175 = scmp.eq.s32.totalorder %s29, 0
      %p176 = por %p174, %p175
      %p177 = scmp.ne.s32.totalorder %s165, %s166
      %p178 = scmp.eq.s32.totalorder %s30, 1
      %p179 = por %p177, %p178
      %p181 = scmp.ne.s32.totalorder %s166, %s180
      %p182 = scmp.eq.s32.totalorder %s30, 0
      %p183 = por %p181, %p182
      %s185 = sadd.s32 %s184, 1
      %p188 = scmp.eq.s32.totalorder %s24, 1
      %p189 = scmp.ne.s32.totalorder %s184, %s186
      %p190 = scmp.eq.s32.totalorder %s24, 0
      %p191 = por %p189, %p190
      %p192 = scmp.ne.s32.totalorder %s184, %s186
      %p193 = scmp.eq.s32.totalorder %s29, 1
      %p194 = por %p192, %p193
      %p195 = scmp.ne.s32.totalorder %s186, %s187
      %p196 = scmp.eq.s32.totalorder %s29, 0
      %p197 = por %p195, %p196
      %p198 = scmp.ne.s32.totalorder %s186, %s187
      %p199 = scmp.eq.s32.totalorder %s30, 1
      %p200 = por %p198, %p199
      %p202 = scmp.ne.s32.totalorder %s187, %s201
      %p203 = scmp.eq.s32.totalorder %s30, 0
      %p204 = por %p202, %p203
      %s206 = sadd.s32 %s205, 1
      %p209 = scmp.eq.s32.totalorder %s24, 1
      %p210 = scmp.ne.s32.totalorder %s205, %s207
      %p211 = scmp.eq.s32.totalorder %s24, 0
      %p212 = por %p210, %p211
      %p213 = scmp.ne.s32.totalorder %s205, %s207
      %p214 = scmp.eq.s32.totalorder %s29, 1
      %p215 = por %p213, %p214
      %p216 = scmp.ne.s32.totalorder %s207, %s208
      %p217 = scmp.eq.s32.totalorder %s29, 0
      %p218 = por %p216, %p217
      %p219 = scmp.ne.s32.totalorder %s207, %s208
      %p220 = scmp.eq.s32.totalorder %s30, 1
      %p221 = por %p219, %p220
      %p223 = scmp.ne.s32.totalorder %s208, %s222
      %p224 = scmp.eq.s32.totalorder %s30, 0
      %p225 = por %p223, %p224
      %s227 = sadd.s32 %s226, 1
      %p230 = scmp.eq.s32.totalorder %s24, 1
      %p231 = scmp.ne.s32.totalorder %s226, %s228
      %p232 = scmp.eq.s32.totalorder %s24, 0
      %p233 = por %p231, %p232
      %p234 = scmp.ne.s32.totalorder %s226, %s228
      %p235 = scmp.eq.s32.totalorder %s29, 1
      %p236 = por %p234, %p235
      %p237 = scmp.ne.s32.totalorder %s228, %s229
      %p238 = scmp.eq.s32.totalorder %s29, 0
      %p239 = por %p237, %p238
      %p240 = scmp.ne.s32.totalorder %s228, %s229
      %p241 = scmp.eq.s32.totalorder %s30, 1
      %p242 = por %p240, %p241
      %p244 = scmp.ne.s32.totalorder %s229, %s243
      %p245 = scmp.eq.s32.totalorder %s30, 0
      %p246 = por %p244, %p245
      %s248 = sadd.s32 %s247, 1
      %p251 = scmp.eq.s32.totalorder %s24, 1
      %p252 = scmp.ne.s32.totalorder %s247, %s249
      %p253 = scmp.eq.s32.totalorder %s24, 0
      %p254 = por %p252, %p253
      %p255 = scmp.ne.s32.totalorder %s247, %s249
      %p256 = scmp.eq.s32.totalorder %s29, 1
      %p257 = por %p255, %p256
      %p258 = scmp.ne.s32.totalorder %s249, %s250
      %p259 = scmp.eq.s32.totalorder %s29, 0
      %p260 = por %p258, %p259
      %p261 = scmp.ne.s32.totalorder %s249, %s250
      %p262 = scmp.eq.s32.totalorder %s30, 1
      %p263 = por %p261, %p262
      %p265 = scmp.ne.s32.totalorder %s250, %s264
      %p266 = scmp.eq.s32.totalorder %s30, 0
      %p267 = por %p265, %p266
      %s268 = ssub.s32 %s24, %s31
      %p269 = scmp.eq.s32.totalorder %s268, 0
      %s271 = sadd.s32 %s270, 1
      %s272 = scalar_select %p269, %s270, %s271
      %p275 = pneg %p269
      %p276 = scmp.eq.s32.totalorder %s24, 1
      %p277 = por %p275, %p276
      %p278 = scmp.ne.s32.totalorder %s270, %s273
      %p279 = scmp.eq.s32.totalorder %s24, 0
      %p280 = por %p278, %p279
      %p281 = scmp.ne.s32.totalorder %s270, %s273
      %p282 = scmp.eq.s32.totalorder %s29, 1
      %p283 = por %p281, %p282
      %p284 = scmp.ne.s32.totalorder %s273, %s274
      %p285 = scmp.eq.s32.totalorder %s29, 0
      %p286 = por %p284, %p285
      %p287 = scmp.ne.s32.totalorder %s273, %s274
      %p288 = scmp.eq.s32.totalorder %s30, 1
      %p289 = por %p287, %p288
      %p291 = scmp.ne.s32.totalorder %s274, %s290
      %p292 = scmp.eq.s32.totalorder %s30, 0
      %p293 = por %p291, %p292
      %p294 = scmp.le.s32.totalorder 1, %s24
      %p295 = scmp.lt.s32.totalorder %s24, 3
      %p296 = pnand %p294, %p295
      %p297 = pneg %p296
      // Predicated region
      $region9: #{tpu_custom_call.1} parent=5 // pred_check
        _
      $region10: #{tpu_custom_call.1} parent=5 // pred_check_branch
        %299 = sbr.rel (%p296) target = $region12
      $region11: #{tpu_custom_call.1} parent=5 // pred_region
        %s300 = ssub.s32 %s24, 1
        // Predicated region
        $region13: #{tpu_custom_call.1} parent=11 // pred_check
          %p301 = pneg %p71
        $region14: #{tpu_custom_call.1} parent=11 // pred_check_branch
          %303 = sbr.rel (%p301) target = $region16
        $region15: #{tpu_custom_call.1} parent=11 // pred_region
          %s305 = ssub.s32 512, 512
          %306 = vsyncadd [#allocation4], %s305
          %s307 = sshll.u32 [#allocation3], 4
          %s308 = int_to_ptr.vmem [resolvable:$true] %s307
          %313 = dma.hbm_to_vmem [thread:$0]  %s1, 512, %s308, [#allocation4], 128, 128, 8
        $region16: #{tpu_custom_call.1} parent=11 // pred_fallthru
          _
        // Predicated region
        $region17: #{tpu_custom_call.1} parent=11 // pred_check
          %p314 = pneg %p92
        $region18: #{tpu_custom_call.1} parent=11 // pred_check_branch
          %316 = sbr.rel (%p314) target = $region20
        $region19: #{tpu_custom_call.1} parent=11 // pred_region
          _
        $region20: #{tpu_custom_call.1} parent=11 // pred_fallthru
          _
        // Predicated region
        $region21: #{tpu_custom_call.1} parent=11 // pred_check
          %p317 = pneg %p113
        $region22: #{tpu_custom_call.1} parent=11 // pred_check_branch
          %319 = sbr.rel (%p317) target = $region24
        $region23: #{tpu_custom_call.1} parent=11 // pred_region
          _
        $region24: #{tpu_custom_call.1} parent=11 // pred_fallthru
          _
        // Predicated region
        $region25: #{tpu_custom_call.1} parent=11 // pred_check
          %p320 = pneg %p134
        $region26: #{tpu_custom_call.1} parent=11 // pred_check_branch
          %322 = sbr.rel (%p320) target = $region28
        $region27: #{tpu_custom_call.1} parent=11 // pred_region
          _
        $region28: #{tpu_custom_call.1} parent=11 // pred_fallthru
          _
        // Predicated region
        $region29: #{tpu_custom_call.1} parent=11 // pred_check
          %p323 = pneg %p155
        $region30: #{tpu_custom_call.1} parent=11 // pred_check_branch
          %325 = sbr.rel (%p323) target = $region32
        $region31: #{tpu_custom_call.1} parent=11 // pred_region
          %s327 = ssub.s32 4096, 4096
          %328 = vsyncadd [#allocation7], %s327
          %s329 = sshll.u32 [#allocation6], 4
          %s330 = int_to_ptr.vmem [resolvable:$true] %s329
          %335 = dma.hbm_to_vmem [thread:$0]  %s5, 4096, %s330, [#allocation7], 128, 128, 8
        $region32: #{tpu_custom_call.1} parent=11 // pred_fallthru
          _
        // Predicated region
        $region33: #{tpu_custom_call.1} parent=11 // pred_check
          %p336 = pneg %p176
        $region34: #{tpu_custom_call.1} parent=11 // pred_check_branch
          %338 = sbr.rel (%p336) target = $region36
        $region35: #{tpu_custom_call.1} parent=11 // pred_region
          _
        $region36: #{tpu_custom_call.1} parent=11 // pred_fallthru
          _
        // Predicated region
        $region37: #{tpu_custom_call.1} parent=11 // pred_check
          %p339 = pneg %p197
        $region38: #{tpu_custom_call.1} parent=11 // pred_check_branch
          %341 = sbr.rel (%p339) target = $region40
        $region39: #{tpu_custom_call.1} parent=11 // pred_region
          %s343 = ssub.s32 4096, 4096
          %344 = vsyncadd [#allocation7], %s343
          %s345 = sshll.u32 [#allocation8], 4
          %s346 = int_to_ptr.vmem [resolvable:$true] %s345
          %351 = dma.hbm_to_vmem [thread:$0]  %s7, 4096, %s346, [#allocation7], 128, 128, 8
        $region40: #{tpu_custom_call.1} parent=11 // pred_fallthru
          _
        // Predicated region
        $region41: #{tpu_custom_call.1} parent=11 // pred_check
          %p352 = pneg %p218
        $region42: #{tpu_custom_call.1} parent=11 // pred_check_branch
          %354 = sbr.rel (%p352) target = $region44
        $region43: #{tpu_custom_call.1} parent=11 // pred_region
          _
        $region44: #{tpu_custom_call.1} parent=11 // pred_fallthru
          _
        // Predicated region
        $region45: #{tpu_custom_call.1} parent=11 // pred_check
          %p355 = pneg %p239
        $region46: #{tpu_custom_call.1} parent=11 // pred_check_branch
          %357 = sbr.rel (%p355) target = $region48
        $region47: #{tpu_custom_call.1} parent=11 // pred_region
          _
        $region48: #{tpu_custom_call.1} parent=11 // pred_fallthru
          _
        // Predicated region
        $region49: #{tpu_custom_call.1} parent=11 // pred_check
          %p358 = pneg %p260
        $region50: #{tpu_custom_call.1} parent=11 // pred_check_branch
          %360 = sbr.rel (%p358) target = $region52
        $region51: #{tpu_custom_call.1} parent=11 // pred_region
          _
        $region52: #{tpu_custom_call.1} parent=11 // pred_fallthru
          _
      $region12: #{tpu_custom_call.1} parent=5 // pred_fallthru
        _
      %p361 = scmp.lt.s32.totalorder %s24, 2
      // Predicated region
      $region53: #{tpu_custom_call.1} parent=5 // pred_check
        %p362 = pneg %p361
      $region54: #{tpu_custom_call.1} parent=5 // pred_check_branch
        %364 = sbr.rel (%p362) target = $region56
      $region55: #{tpu_custom_call.1} parent=5 // pred_region
        // Predicated region
        $region57: #{tpu_custom_call.1} parent=55 // pred_check
          %p365 = pneg %p44
        $region58: #{tpu_custom_call.1} parent=55 // pred_check_branch
          %367 = sbr.rel (%p365) target = $region60
        $region59: #{tpu_custom_call.1} parent=55 // pred_region
          %s368 = smul.u32 4, %s24
          %p369 = scmp.lt.s32.totalorder %s368, 7
          %s370 = scalar_select %p369, %s368, 7
          %s371 = smul.addr %s370, 8
          %s372 = scalar_lea.vmem %s0, %s371
          %s373 = smul.u32 4, %s24
        $region60: #{tpu_custom_call.1} parent=55 // pred_fallthru
          _
      $region56: #{tpu_custom_call.1} parent=5 // pred_fallthru
        _
      %p374 = scmp.le.s32.totalorder 1, %s24
      %p375 = scmp.lt.s32.totalorder %s24, 3
      %p376 = pnand %p374, %p375
      %p377 = pneg %p376
      // Predicated region
      $region61: #{tpu_custom_call.1} parent=5 // pred_check
        _
      $region62: #{tpu_custom_call.1} parent=5 // pred_check_branch
        %379 = sbr.rel (%p376) target = $region64
      $region63: #{tpu_custom_call.1} parent=5 // pred_region
        %s380 = ssub.s32 %s24, 1
        // Predicated region
        $region65: #{tpu_custom_call.1} parent=63 // pred_check
          %p381 = pneg %p71
        $region66: #{tpu_custom_call.1} parent=63 // pred_check_branch
          %383 = sbr.rel (%p381) target = $region68
        $region67: #{tpu_custom_call.1} parent=63 // pred_region
          %384 = dma.done [#allocation4], 512
        $region68: #{tpu_custom_call.1} parent=63 // pred_fallthru
          _
        // Predicated region
        $region69: #{tpu_custom_call.1} parent=63 // pred_check
          %p385 = pneg %p155
        $region70: #{tpu_custom_call.1} parent=63 // pred_check_branch
          %387 = sbr.rel (%p385) target = $region72
        $region71: #{tpu_custom_call.1} parent=63 // pred_region
          %388 = dma.done [#allocation7], 4096
        $region72: #{tpu_custom_call.1} parent=63 // pred_fallthru
          _
        // Predicated region
        $region73: #{tpu_custom_call.1} parent=63 // pred_check
          %p389 = pneg %p197
        $region74: #{tpu_custom_call.1} parent=63 // pred_check_branch
          %391 = sbr.rel (%p389) target = $region76
        $region75: #{tpu_custom_call.1} parent=63 // pred_region
          %392 = dma.done [#allocation7], 4096
        $region76: #{tpu_custom_call.1} parent=63 // pred_fallthru
          _
        %s393 = smul.u32 4, %s29
        %p394 = scmp.lt.s32.totalorder %s393, 7
        %s395 = scalar_select %p394, %s393, 7
        %s396 = smul.addr %s395, 8
        %s397 = scalar_lea.vmem %s0, %s396
        %p398 = pneg %p50
        %p399 = pneg %p47
        %p400 = pneg %p71
        %p401 = pneg %p68
        %p402 = pneg %p92
        %p403 = pneg %p89
        %p404 = pneg %p113
        %p405 = pneg %p110
        %p406 = pneg %p134
        %p407 = pneg %p131
        %p408 = pneg %p155
        %p409 = pneg %p152
        %p410 = pneg %p176
        %p411 = pneg %p173
        %p412 = pneg %p197
        %p413 = pneg %p194
        %p414 = pneg %p218
        %p415 = pneg %p215
        %p416 = pneg %p239
        %p417 = pneg %p236
        %p418 = pneg %p260
        %p419 = pneg %p257
        %p420 = pneg %p286
        %p421 = pneg %p283
        %s422 = sand.u32 %s273, 1
        %s423 = scalar_lea.sflag [#allocation5], %s422
        %s424 = sand.u32 %s273, 1
        %s425 = scalar_lea.vmem [#allocation9], %s424
        %s426 = smul.u32 4, %s29
        %p427 = scmp.lt.s32.totalorder %s426, 7
        %s428 = scalar_select %p427, %s426, 7
        %s429 = smul.addr %s428, 8
        %s430 = scalar_lea.vmem %s0, %s429
        %s431 = smul.u32 4, %s29
        %v432 = vld [vmem:[%s430] sm:$0xff]
        %v433 = vld [vmem:[%s430 + $0x8] sm:$0xff]
        %v434 = vld [vmem:[%s430 + $0x10] sm:$0xff]
        %v435 = vld [vmem:[%s430 + $0x18] sm:$0xff]
        %v436 = vunpack.c.0.s8 %v432
        %v437 = vunpack.c.1.s8 %v432
        %v438 = vunpack.c.2.s8 %v432
        %v439 = vunpack.c.3.s8 %v432
        %v440 = vunpack.c.0.s8 %v433
        %v441 = vunpack.c.1.s8 %v433
        %v442 = vunpack.c.2.s8 %v433
        %v443 = vunpack.c.3.s8 %v433
        %v444 = vunpack.c.0.s8 %v434
        %v445 = vunpack.c.1.s8 %v434
        %v446 = vunpack.c.2.s8 %v434
        %v447 = vunpack.c.3.s8 %v434
        %v448 = vunpack.c.0.s8 %v435
        %v449 = vunpack.c.1.s8 %v435
        %v450 = vunpack.c.2.s8 %v435
        %v451 = vunpack.c.3.s8 %v435
        %v452 = vcvt.s32.f32 %v436
        %v453 = vcvt.s32.f32 %v437
        %v454 = vcvt.s32.f32 %v438
        %v455 = vcvt.s32.f32 %v439
        %v456 = vcvt.s32.f32 %v440
        %v457 = vcvt.s32.f32 %v441
        %v458 = vcvt.s32.f32 %v442
        %v459 = vcvt.s32.f32 %v443
        %v460 = vcvt.s32.f32 %v444
        %v461 = vcvt.s32.f32 %v445
        %v462 = vcvt.s32.f32 %v446
        %v463 = vcvt.s32.f32 %v447
        %v464 = vcvt.s32.f32 %v448
        %v465 = vcvt.s32.f32 %v449
        %v466 = vcvt.s32.f32 %v450
        %v467 = vcvt.s32.f32 %v451
        %v468 = vld [vmem:[#allocation3] sm:$0xff]
        %v469 = vld [vmem:[#allocation3 + $0x8] sm:$0xff]
        %v470 = vld [vmem:[#allocation3 + $0x10] sm:$0xff]
        %v471 = vld [vmem:[#allocation3 + $0x18] sm:$0xff]
        %v472 = vld [vmem:[%s2] sm:$0x1]
        %v474 = vlaneseq
        %v475 = vshrl.u32 %v474, 7
        %v476 = vsub.s32 0, %v475
        %v477 = vrot.slane %v472, %v476
        %vm479 = vcmask 261120
        %v481 = vsel %vm479, %v452, 0
        %v484 = vsel %vm479, %v453, 0
        %v487 = vsel %vm479, %v454, 0
        %v490 = vsel %vm479, %v455, 0
        %v493 = vsel %vm479, %v456, 0
        %v496 = vsel %vm479, %v457, 0
        %v499 = vsel %vm479, %v458, 0
        %v502 = vsel %vm479, %v459, 0
        %v505 = vsel %vm479, %v460, 0
        %v508 = vsel %vm479, %v461, 0
        %v511 = vsel %vm479, %v462, 0
        %v514 = vsel %vm479, %v463, 0
        %v517 = vsel %vm479, %v464, 0
        %v520 = vsel %vm479, %v465, 0
        %v523 = vsel %vm479, %v466, 0
        %v526 = vsel %vm479, %v467, 0
        %528 = vmatprep.subr.mxu0 0.0
        %529 = vmatpush1.msra.mxu0 0.0
        %530 = vmatprep.subr.mxu0 0.0
        %531 = vmatpush1.msra.mxu0 0.0
        %532 = vmatprep.subr.mxu0 0.0
        %533 = vmatpush1.msra.mxu0 0.0
        %534 = vmatprep.subr.mxu0 0.0
        %535 = vmatpush1.msra.mxu0 0.0
        %536 = vmatprep.subr.mxu0 0.0
        %537 = vmatpush1.msra.mxu0 0.0
        %538 = vmatprep.subr.mxu0 0.0
        %539 = vmatpush1.msra.mxu0 0.0
        %540 = vmatprep.subr.mxu0 0.0
        %541 = vmatpush1.msra.mxu0 0.0
        %542 = vmatprep.subr.mxu0 0.0
        %543 = vmatpush1.msra.mxu0 0.0
        %544 = vmatprep.subr.mxu0 0.0
        %545 = vmatpush1.msra.mxu0 0.0
        %546 = vmatprep.subr.mxu0 0.0
        %547 = vmatpush1.msra.mxu0 0.0
        %548 = vmatprep.subr.mxu0 0.0
        %549 = vmatpush1.msra.mxu0 0.0
        %550 = vmatprep.subr.mxu0 0.0
        %551 = vmatpush1.msra.mxu0 0.0
        %552 = vmatprep.subr.mxu0 0.0
        %553 = vmatpush1.msra.mxu0 %v471
        %554 = vmatprep.subr.mxu0 0.0
        %555 = vmatpush1.msra.mxu0 %v470
        %556 = vmatprep.subr.mxu0 0.0
        %557 = vmatpush1.msra.mxu0 %v469
        %558 = vmatprep.subr.mxu0 0.0
        %559 = vmatpush1.msra.mxu0 %v468
        %560 = vmatprep.subr.mxu0 0.0
        %561 = vmatpush2.msra.mxu0 0.0
        %562 = vmatprep.subr.mxu0 0.0
        %563 = vmatpush2.msra.mxu0 0.0
        %564 = vmatprep.subr.mxu0 0.0
        %565 = vmatpush2.msra.mxu0 0.0
        %566 = vmatprep.subr.mxu0 0.0
        %567 = vmatpush2.msra.mxu0 0.0
        %568 = vmatprep.subr.mxu0 0.0
        %569 = vmatpush2.msra.mxu0 0.0
        %570 = vmatprep.subr.mxu0 0.0
        %571 = vmatpush2.msra.mxu0 0.0
        %572 = vmatprep.subr.mxu0 0.0
        %573 = vmatpush2.msra.mxu0 0.0
        %574 = vmatprep.subr.mxu0 0.0
        %575 = vmatpush2.msra.mxu0 0.0
        %576 = vmatprep.subr.mxu0 0.0
        %577 = vmatpush2.msra.mxu0 0.0
        %578 = vmatprep.subr.mxu0 0.0
        %579 = vmatpush2.msra.mxu0 0.0
        %580 = vmatprep.subr.mxu0 0.0
        %581 = vmatpush2.msra.mxu0 0.0
        %582 = vmatprep.subr.mxu0 0.0
        %583 = vmatpush2.msra.mxu0 0.0
        %584 = vmatprep.subr.mxu0 0.0
        %585 = vmatpush2.msra.mxu0 0.0
        %586 = vmatprep.subr.mxu0 0.0
        %587 = vmatpush2.msra.mxu0 0.0
        %588 = vmatprep.subr.mxu0 0.0
        %589 = vmatpush2.msra.mxu0 0.0
        %590 = vmatprep.subr.mxu0 0.0
        %591 = vmatpush2.msra.mxu0 0.0
        %592 = vmatprep.mubr.f32.mxu0 0.0
        %593 = vmatmul.mubr.f32.gmra.mxu0 %v481
        %v594 = vpop.f32.mrf.mxu0
        %v595 = vadd.f32 %v477, %v594
        %v596 = vpop.f32.mrf.mxu0
        %597 = vmatprep.mubr.f32.mxu0 0.0
        %598 = vmatmul.mubr.f32.gmra.mxu0 %v484
        %v599 = vpop.f32.mrf.mxu0
        %v600 = vadd.f32 %v477, %v599
        %v601 = vpop.f32.mrf.mxu0
        %602 = vmatprep.mubr.f32.mxu0 0.0
        %603 = vmatmul.mubr.f32.gmra.mxu0 %v487
        %v604 = vpop.f32.mrf.mxu0
        %v605 = vadd.f32 %v477, %v604
        %v606 = vpop.f32.mrf.mxu0
        %607 = vmatprep.mubr.f32.mxu0 0.0
        %608 = vmatmul.mubr.f32.gmra.mxu0 %v490
        %v609 = vpop.f32.mrf.mxu0
        %v610 = vadd.f32 %v477, %v609
        %v611 = vpop.f32.mrf.mxu0
        %612 = vmatprep.mubr.f32.mxu0 0.0
        %613 = vmatmul.mubr.f32.gmra.mxu0 %v493
        %v614 = vpop.f32.mrf.mxu0
        %v615 = vadd.f32 %v477, %v614
        %v616 = vpop.f32.mrf.mxu0
        %617 = vmatprep.mubr.f32.mxu0 0.0
        %618 = vmatmul.mubr.f32.gmra.mxu0 %v496
        %v619 = vpop.f32.mrf.mxu0
        %v620 = vadd.f32 %v477, %v619
        %v621 = vpop.f32.mrf.mxu0
        %622 = vmatprep.mubr.f32.mxu0 0.0
        %623 = vmatmul.mubr.f32.gmra.mxu0 %v499
        %v624 = vpop.f32.mrf.mxu0
        %v625 = vadd.f32 %v477, %v624
        %v626 = vpop.f32.mrf.mxu0
        %627 = vmatprep.mubr.f32.mxu0 0.0
        %628 = vmatmul.mubr.f32.gmra.mxu0 %v502
        %v629 = vpop.f32.mrf.mxu0
        %v630 = vadd.f32 %v477, %v629
        %v631 = vpop.f32.mrf.mxu0
        %632 = vmatprep.mubr.f32.mxu0 0.0
        %633 = vmatmul.mubr.f32.gmra.mxu0 %v505
        %v634 = vpop.f32.mrf.mxu0
        %v635 = vadd.f32 %v477, %v634
        %v636 = vpop.f32.mrf.mxu0
        %637 = vmatprep.mubr.f32.mxu0 0.0
        %638 = vmatmul.mubr.f32.gmra.mxu0 %v508
        %v639 = vpop.f32.mrf.mxu0
        %v640 = vadd.f32 %v477, %v639
        %v641 = vpop.f32.mrf.mxu0
        %642 = vmatprep.mubr.f32.mxu0 0.0
        %643 = vmatmul.mubr.f32.gmra.mxu0 %v511
        %v644 = vpop.f32.mrf.mxu0
        %v645 = vadd.f32 %v477, %v644
        %v646 = vpop.f32.mrf.mxu0
        %647 = vmatprep.mubr.f32.mxu0 0.0
        %648 = vmatmul.mubr.f32.gmra.mxu0 %v514
        %v649 = vpop.f32.mrf.mxu0
        %v650 = vadd.f32 %v477, %v649
        %v651 = vpop.f32.mrf.mxu0
        %652 = vmatprep.mubr.f32.mxu0 0.0
        %653 = vmatmul.mubr.f32.gmra.mxu0 %v517
        %v654 = vpop.f32.mrf.mxu0
        %v655 = vadd.f32 %v477, %v654
        %v656 = vpop.f32.mrf.mxu0
        %657 = vmatprep.mubr.f32.mxu0 0.0
        %658 = vmatmul.mubr.f32.gmra.mxu0 %v520
        %v659 = vpop.f32.mrf.mxu0
        %v660 = vadd.f32 %v477, %v659
        %v661 = vpop.f32.mrf.mxu0
        %662 = vmatprep.mubr.f32.mxu0 0.0
        %663 = vmatmul.mubr.f32.gmra.mxu0 %v523
        %v664 = vpop.f32.mrf.mxu0
        %v665 = vadd.f32 %v477, %v664
        %v666 = vpop.f32.mrf.mxu0
        %667 = vmatprep.mubr.f32.mxu0 0.0
        %668 = vmatmul.mubr.f32.gmra.mxu0 %v526
        %v669 = vpop.f32.mrf.mxu0
        %v670 = vadd.f32 %v477, %v669
        %v671 = vpop.f32.mrf.mxu0
        %672 = vdwg.mxu0
        %v673 = vmax.f32 %v595, 0.0
        %v674 = vmax.f32 %v600, 0.0
        %v675 = vmax.f32 %v605, 0.0
        %v676 = vmax.f32 %v610, 0.0
        %v677 = vmax.f32 %v615, 0.0
        %v678 = vmax.f32 %v620, 0.0
        %v679 = vmax.f32 %v625, 0.0
        %v680 = vmax.f32 %v630, 0.0
        %v681 = vmax.f32 %v635, 0.0
        %v682 = vmax.f32 %v640, 0.0
        %v683 = vmax.f32 %v645, 0.0
        %v684 = vmax.f32 %v650, 0.0
        %v685 = vmax.f32 %v655, 0.0
        %v686 = vmax.f32 %v660, 0.0
        %v687 = vmax.f32 %v665, 0.0
        %v688 = vmax.f32 %v670, 0.0
        %v689 = vld [vmem:[%s3] sm:$0xff]
        %v690 = vld [vmem:[%s3 + $0x8] sm:$0xff]
        %v691 = vld [vmem:[%s3 + $0x10] sm:$0xff]
        %v692 = vld [vmem:[%s3 + $0x18] sm:$0xff]
        %v693 = vld [vmem:[%s3 + $0x20] sm:$0xff]
        %v694 = vld [vmem:[%s3 + $0x28] sm:$0xff]
        %v695 = vld [vmem:[%s3 + $0x30] sm:$0xff]
        %v696 = vld [vmem:[%s3 + $0x38] sm:$0xff]
        %v697 = vld [vmem:[%s4] sm:$0x1]
        %v699 = vlaneseq
        %v700 = vshrl.u32 %v699, 7
        %v701 = vsub.s32 0, %v700
        %v702 = vrot.slane %v697, %v701
        %vm704 = vcmask 523264
        %v706 = vsel %vm704, %v673, 0
        %v709 = vsel %vm704, %v674, 0
        %v712 = vsel %vm704, %v675, 0
        %v715 = vsel %vm704, %v676, 0
        %v718 = vsel %vm704, %v677, 0
        %v721 = vsel %vm704, %v678, 0
        %v724 = vsel %vm704, %v679, 0
        %v727 = vsel %vm704, %v680, 0
        %v730 = vsel %vm704, %v681, 0
        %v733 = vsel %vm704, %v682, 0
        %v736 = vsel %vm704, %v683, 0
        %v739 = vsel %vm704, %v684, 0
        %v742 = vsel %vm704, %v685, 0
        %v745 = vsel %vm704, %v686, 0
        %v748 = vsel %vm704, %v687, 0
        %v751 = vsel %vm704, %v688, 0
        %753 = vmatprep.subr.mxu0 0.0
        %754 = vmatpush1.msra.mxu0 0.0
        %755 = vmatprep.subr.mxu0 0.0
        %756 = vmatpush1.msra.mxu0 0.0
        %757 = vmatprep.subr.mxu0 0.0
        %758 = vmatpush1.msra.mxu0 0.0
        %759 = vmatprep.subr.mxu0 0.0
        %760 = vmatpush1.msra.mxu0 0.0
        %761 = vmatprep.subr.mxu0 0.0
        %762 = vmatpush1.msra.mxu0 0.0
        %763 = vmatprep.subr.mxu0 0.0
        %764 = vmatpush1.msra.mxu0 0.0
        %765 = vmatprep.subr.mxu0 0.0
        %766 = vmatpush1.msra.mxu0 0.0
        %767 = vmatprep.subr.mxu0 0.0
        %768 = vmatpush1.msra.mxu0 0.0
        %769 = vmatprep.subr.mxu0 0.0
        %770 = vmatpush1.msra.mxu0 %v696
        %771 = vmatprep.subr.mxu0 0.0
        %772 = vmatpush1.msra.mxu0 %v695
        %773 = vmatprep.subr.mxu0 0.0
        %774 = vmatpush1.msra.mxu0 %v694
        %775 = vmatprep.subr.mxu0 0.0
        %776 = vmatpush1.msra.mxu0 %v693
        %777 = vmatprep.subr.mxu0 0.0
        %778 = vmatpush1.msra.mxu0 %v692
        %779 = vmatprep.subr.mxu0 0.0
        %780 = vmatpush1.msra.mxu0 %v691
        %781 = vmatprep.subr.mxu0 0.0
        %782 = vmatpush1.msra.mxu0 %v690
        %783 = vmatprep.subr.mxu0 0.0
        %784 = vmatpush1.msra.mxu0 %v689
        %785 = vmatprep.subr.mxu0 0.0
        %786 = vmatpush2.msra.mxu0 0.0
        %787 = vmatprep.subr.mxu0 0.0
        %788 = vmatpush2.msra.mxu0 0.0
        %789 = vmatprep.subr.mxu0 0.0
        %790 = vmatpush2.msra.mxu0 0.0
        %791 = vmatprep.subr.mxu0 0.0
        %792 = vmatpush2.msra.mxu0 0.0
        %793 = vmatprep.subr.mxu0 0.0
        %794 = vmatpush2.msra.mxu0 0.0
        %795 = vmatprep.subr.mxu0 0.0
        %796 = vmatpush2.msra.mxu0 0.0
        %797 = vmatprep.subr.mxu0 0.0
        %798 = vmatpush2.msra.mxu0 0.0
        %799 = vmatprep.subr.mxu0 0.0
        %800 = vmatpush2.msra.mxu0 0.0
        %801 = vmatprep.subr.mxu0 0.0
        %802 = vmatpush2.msra.mxu0 0.0
        %803 = vmatprep.subr.mxu0 0.0
        %804 = vmatpush2.msra.mxu0 0.0
        %805 = vmatprep.subr.mxu0 0.0
        %806 = vmatpush2.msra.mxu0 0.0
        %807 = vmatprep.subr.mxu0 0.0
        %808 = vmatpush2.msra.mxu0 0.0
        %809 = vmatprep.subr.mxu0 0.0
        %810 = vmatpush2.msra.mxu0 0.0
        %811 = vmatprep.subr.mxu0 0.0
        %812 = vmatpush2.msra.mxu0 0.0
        %813 = vmatprep.subr.mxu0 0.0
        %814 = vmatpush2.msra.mxu0 0.0
        %815 = vmatprep.subr.mxu0 0.0
        %816 = vmatpush2.msra.mxu0 0.0
        %817 = vmatprep.mubr.f32.mxu0 0.0
        %818 = vmatmul.mubr.f32.gmra.mxu0 %v706
        %v819 = vpop.f32.mrf.mxu0
        %v820 = vadd.f32 %v702, %v819
        %v821 = vpop.f32.mrf.mxu0
        %822 = vmatprep.mubr.f32.mxu0 0.0
        %823 = vmatmul.mubr.f32.gmra.mxu0 %v709
        %v824 = vpop.f32.mrf.mxu0
        %v825 = vadd.f32 %v702, %v824
        %v826 = vpop.f32.mrf.mxu0
        %827 = vmatprep.mubr.f32.mxu0 0.0
        %828 = vmatmul.mubr.f32.gmra.mxu0 %v712
        %v829 = vpop.f32.mrf.mxu0
        %v830 = vadd.f32 %v702, %v829
        %v831 = vpop.f32.mrf.mxu0
        %832 = vmatprep.mubr.f32.mxu0 0.0
        %833 = vmatmul.mubr.f32.gmra.mxu0 %v715
        %v834 = vpop.f32.mrf.mxu0
        %v835 = vadd.f32 %v702, %v834
        %v836 = vpop.f32.mrf.mxu0
        %837 = vmatprep.mubr.f32.mxu0 0.0
        %838 = vmatmul.mubr.f32.gmra.mxu0 %v718
        %v839 = vpop.f32.mrf.mxu0
        %v840 = vadd.f32 %v702, %v839
        %v841 = vpop.f32.mrf.mxu0
        %842 = vmatprep.mubr.f32.mxu0 0.0
        %843 = vmatmul.mubr.f32.gmra.mxu0 %v721
        %v844 = vpop.f32.mrf.mxu0
        %v845 = vadd.f32 %v702, %v844
        %v846 = vpop.f32.mrf.mxu0
        %847 = vmatprep.mubr.f32.mxu0 0.0
        %848 = vmatmul.mubr.f32.gmra.mxu0 %v724
        %v849 = vpop.f32.mrf.mxu0
        %v850 = vadd.f32 %v702, %v849
        %v851 = vpop.f32.mrf.mxu0
        %852 = vmatprep.mubr.f32.mxu0 0.0
        %853 = vmatmul.mubr.f32.gmra.mxu0 %v727
        %v854 = vpop.f32.mrf.mxu0
        %v855 = vadd.f32 %v702, %v854
        %v856 = vpop.f32.mrf.mxu0
        %857 = vmatprep.mubr.f32.mxu0 0.0
        %858 = vmatmul.mubr.f32.gmra.mxu0 %v730
        %v859 = vpop.f32.mrf.mxu0
        %v860 = vadd.f32 %v702, %v859
        %v861 = vpop.f32.mrf.mxu0
        %862 = vmatprep.mubr.f32.mxu0 0.0
        %863 = vmatmul.mubr.f32.gmra.mxu0 %v733
        %v864 = vpop.f32.mrf.mxu0
        %v865 = vadd.f32 %v702, %v864
        %v866 = vpop.f32.mrf.mxu0
        %867 = vmatprep.mubr.f32.mxu0 0.0
        %868 = vmatmul.mubr.f32.gmra.mxu0 %v736
        %v869 = vpop.f32.mrf.mxu0
        %v870 = vadd.f32 %v702, %v869
        %v871 = vpop.f32.mrf.mxu0
        %872 = vmatprep.mubr.f32.mxu0 0.0
        %873 = vmatmul.mubr.f32.gmra.mxu0 %v739
        %v874 = vpop.f32.mrf.mxu0
        %v875 = vadd.f32 %v702, %v874
        %v876 = vpop.f32.mrf.mxu0
        %877 = vmatprep.mubr.f32.mxu0 0.0
        %878 = vmatmul.mubr.f32.gmra.mxu0 %v742
        %v879 = vpop.f32.mrf.mxu0
        %v880 = vadd.f32 %v702, %v879
        %v881 = vpop.f32.mrf.mxu0
        %882 = vmatprep.mubr.f32.mxu0 0.0
        %883 = vmatmul.mubr.f32.gmra.mxu0 %v745
        %v884 = vpop.f32.mrf.mxu0
        %v885 = vadd.f32 %v702, %v884
        %v886 = vpop.f32.mrf.mxu0
        %887 = vmatprep.mubr.f32.mxu0 0.0
        %888 = vmatmul.mubr.f32.gmra.mxu0 %v748
        %v889 = vpop.f32.mrf.mxu0
        %v890 = vadd.f32 %v702, %v889
        %v891 = vpop.f32.mrf.mxu0
        %892 = vmatprep.mubr.f32.mxu0 0.0
        %893 = vmatmul.mubr.f32.gmra.mxu0 %v751
        %v894 = vpop.f32.mrf.mxu0
        %v895 = vadd.f32 %v702, %v894
        %v896 = vpop.f32.mrf.mxu0
        %897 = vdwg.mxu0
        %v898 = vmax.f32 %v820, 0.0
        %v899 = vmax.f32 %v825, 0.0
        %v900 = vmax.f32 %v830, 0.0
        %v901 = vmax.f32 %v835, 0.0
        %v902 = vmax.f32 %v840, 0.0
        %v903 = vmax.f32 %v845, 0.0
        %v904 = vmax.f32 %v850, 0.0
        %v905 = vmax.f32 %v855, 0.0
        %v906 = vmax.f32 %v860, 0.0
        %v907 = vmax.f32 %v865, 0.0
        %v908 = vmax.f32 %v870, 0.0
        %v909 = vmax.f32 %v875, 0.0
        %v910 = vmax.f32 %v880, 0.0
        %v911 = vmax.f32 %v885, 0.0
        %v912 = vmax.f32 %v890, 0.0
        %v913 = vmax.f32 %v895, 0.0
        %v914 = vld [vmem:[#allocation6] sm:$0xff]
        %v915 = vld [vmem:[#allocation6 + $0x8] sm:$0xff]
        %v916 = vld [vmem:[#allocation6 + $0x10] sm:$0xff]
        %v917 = vld [vmem:[#allocation6 + $0x18] sm:$0xff]
        %v918 = vld [vmem:[#allocation6 + $0x20] sm:$0xff]
        %v919 = vld [vmem:[#allocation6 + $0x28] sm:$0xff]
        %v920 = vld [vmem:[#allocation6 + $0x30] sm:$0xff]
        %v921 = vld [vmem:[#allocation6 + $0x38] sm:$0xff]
        %v922 = vld [vmem:[#allocation6 + $0x40] sm:$0xff]
        %v923 = vld [vmem:[#allocation6 + $0x48] sm:$0xff]
        %v924 = vld [vmem:[#allocation6 + $0x50] sm:$0xff]
        %v925 = vld [vmem:[#allocation6 + $0x58] sm:$0xff]
        %v926 = vld [vmem:[#allocation6 + $0x60] sm:$0xff]
        %v927 = vld [vmem:[#allocation6 + $0x68] sm:$0xff]
        %v928 = vld [vmem:[#allocation6 + $0x70] sm:$0xff]
        %v929 = vld [vmem:[#allocation6 + $0x78] sm:$0xff]
        %v930 = vld [vmem:[%s6] sm:$0x1]
        %v932 = vlaneseq
        %v933 = vshrl.u32 %v932, 7
        %v934 = vsub.s32 0, %v933
        %v935 = vrot.slane %v930, %v934
        %937 = vmatprep.subr.mxu0 0.0
        %938 = vmatpush1.msra.mxu0 %v929
        %939 = vmatprep.subr.mxu0 0.0
        %940 = vmatpush1.msra.mxu0 %v928
        %941 = vmatprep.subr.mxu0 0.0
        %942 = vmatpush1.msra.mxu0 %v927
        %943 = vmatprep.subr.mxu0 0.0
        %944 = vmatpush1.msra.mxu0 %v926
        %945 = vmatprep.subr.mxu0 0.0
        %946 = vmatpush1.msra.mxu0 %v925
        %947 = vmatprep.subr.mxu0 0.0
        %948 = vmatpush1.msra.mxu0 %v924
        %949 = vmatprep.subr.mxu0 0.0
        %950 = vmatpush1.msra.mxu0 %v923
        %951 = vmatprep.subr.mxu0 0.0
        %952 = vmatpush1.msra.mxu0 %v922
        %953 = vmatprep.subr.mxu0 0.0
        %954 = vmatpush1.msra.mxu0 %v921
        %955 = vmatprep.subr.mxu0 0.0
        %956 = vmatpush1.msra.mxu0 %v920
        %957 = vmatprep.subr.mxu0 0.0
        %958 = vmatpush1.msra.mxu0 %v919
        %959 = vmatprep.subr.mxu0 0.0
        %960 = vmatpush1.msra.mxu0 %v918
        %961 = vmatprep.subr.mxu0 0.0
        %962 = vmatpush1.msra.mxu0 %v917
        %963 = vmatprep.subr.mxu0 0.0
        %964 = vmatpush1.msra.mxu0 %v916
        %965 = vmatprep.subr.mxu0 0.0
        %966 = vmatpush1.msra.mxu0 %v915
        %967 = vmatprep.subr.mxu0 0.0
        %968 = vmatpush1.msra.mxu0 %v914
        %969 = vmatprep.subr.mxu0 0.0
        %970 = vmatpush2.msra.mxu0 0.0
        %971 = vmatprep.subr.mxu0 0.0
        %972 = vmatpush2.msra.mxu0 0.0
        %973 = vmatprep.subr.mxu0 0.0
        %974 = vmatpush2.msra.mxu0 0.0
        %975 = vmatprep.subr.mxu0 0.0
        %976 = vmatpush2.msra.mxu0 0.0
        %977 = vmatprep.subr.mxu0 0.0
        %978 = vmatpush2.msra.mxu0 0.0
        %979 = vmatprep.subr.mxu0 0.0
        %980 = vmatpush2.msra.mxu0 0.0
        %981 = vmatprep.subr.mxu0 0.0
        %982 = vmatpush2.msra.mxu0 0.0
        %983 = vmatprep.subr.mxu0 0.0
        %984 = vmatpush2.msra.mxu0 0.0
        %985 = vmatprep.subr.mxu0 0.0
        %986 = vmatpush2.msra.mxu0 0.0
        %987 = vmatprep.subr.mxu0 0.0
        %988 = vmatpush2.msra.mxu0 0.0
        %989 = vmatprep.subr.mxu0 0.0
        %990 = vmatpush2.msra.mxu0 0.0
        %991 = vmatprep.subr.mxu0 0.0
        %992 = vmatpush2.msra.mxu0 0.0
        %993 = vmatprep.subr.mxu0 0.0
        %994 = vmatpush2.msra.mxu0 0.0
        %995 = vmatprep.subr.mxu0 0.0
        %996 = vmatpush2.msra.mxu0 0.0
        %997 = vmatprep.subr.mxu0 0.0
        %998 = vmatpush2.msra.mxu0 0.0
        %999 = vmatprep.subr.mxu0 0.0
        %1000 = vmatpush2.msra.mxu0 0.0
        %1001 = vmatprep.mubr.f32.mxu0 0.0
        %1002 = vmatmul.mubr.f32.gmra.mxu0 %v898
        %v1003 = vpop.f32.mrf.mxu0
        %v1004 = vadd.f32 %v935, %v1003
        %v1005 = vpop.f32.mrf.mxu0
        %1006 = vmatprep.mubr.f32.mxu0 0.0
        %1007 = vmatmul.mubr.f32.gmra.mxu0 %v899
        %v1008 = vpop.f32.mrf.mxu0
        %v1009 = vadd.f32 %v935, %v1008
        %v1010 = vpop.f32.mrf.mxu0
        %1011 = vmatprep.mubr.f32.mxu0 0.0
        %1012 = vmatmul.mubr.f32.gmra.mxu0 %v900
        %v1013 = vpop.f32.mrf.mxu0
        %v1014 = vadd.f32 %v935, %v1013
        %v1015 = vpop.f32.mrf.mxu0
        %1016 = vmatprep.mubr.f32.mxu0 0.0
        %1017 = vmatmul.mubr.f32.gmra.mxu0 %v901
        %v1018 = vpop.f32.mrf.mxu0
        %v1019 = vadd.f32 %v935, %v1018
        %v1020 = vpop.f32.mrf.mxu0
        %1021 = vmatprep.mubr.f32.mxu0 0.0
        %1022 = vmatmul.mubr.f32.gmra.mxu0 %v902
        %v1023 = vpop.f32.mrf.mxu0
        %v1024 = vadd.f32 %v935, %v1023
        %v1025 = vpop.f32.mrf.mxu0
        %1026 = vmatprep.mubr.f32.mxu0 0.0
        %1027 = vmatmul.mubr.f32.gmra.mxu0 %v903
        %v1028 = vpop.f32.mrf.mxu0
        %v1029 = vadd.f32 %v935, %v1028
        %v1030 = vpop.f32.mrf.mxu0
        %1031 = vmatprep.mubr.f32.mxu0 0.0
        %1032 = vmatmul.mubr.f32.gmra.mxu0 %v904
        %v1033 = vpop.f32.mrf.mxu0
        %v1034 = vadd.f32 %v935, %v1033
        %v1035 = vpop.f32.mrf.mxu0
        %1036 = vmatprep.mubr.f32.mxu0 0.0
        %1037 = vmatmul.mubr.f32.gmra.mxu0 %v905
        %v1038 = vpop.f32.mrf.mxu0
        %v1039 = vadd.f32 %v935, %v1038
        %v1040 = vpop.f32.mrf.mxu0
        %1041 = vmatprep.mubr.f32.mxu0 0.0
        %1042 = vmatmul.mubr.f32.gmra.mxu0 %v906
        %v1043 = vpop.f32.mrf.mxu0
        %v1044 = vadd.f32 %v935, %v1043
        %v1045 = vpop.f32.mrf.mxu0
        %1046 = vmatprep.mubr.f32.mxu0 0.0
        %1047 = vmatmul.mubr.f32.gmra.mxu0 %v907
        %v1048 = vpop.f32.mrf.mxu0
        %v1049 = vadd.f32 %v935, %v1048
        %v1050 = vpop.f32.mrf.mxu0
        %1051 = vmatprep.mubr.f32.mxu0 0.0
        %1052 = vmatmul.mubr.f32.gmra.mxu0 %v908
        %v1053 = vpop.f32.mrf.mxu0
        %v1054 = vadd.f32 %v935, %v1053
        %v1055 = vpop.f32.mrf.mxu0
        %1056 = vmatprep.mubr.f32.mxu0 0.0
        %1057 = vmatmul.mubr.f32.gmra.mxu0 %v909
        %v1058 = vpop.f32.mrf.mxu0
        %v1059 = vadd.f32 %v935, %v1058
        %v1060 = vpop.f32.mrf.mxu0
        %1061 = vmatprep.mubr.f32.mxu0 0.0
        %1062 = vmatmul.mubr.f32.gmra.mxu0 %v910
        %v1063 = vpop.f32.mrf.mxu0
        %v1064 = vadd.f32 %v935, %v1063
        %v1065 = vpop.f32.mrf.mxu0
        %1066 = vmatprep.mubr.f32.mxu0 0.0
        %1067 = vmatmul.mubr.f32.gmra.mxu0 %v911
        %v1068 = vpop.f32.mrf.mxu0
        %v1069 = vadd.f32 %v935, %v1068
        %v1070 = vpop.f32.mrf.mxu0
        %1071 = vmatprep.mubr.f32.mxu0 0.0
        %1072 = vmatmul.mubr.f32.gmra.mxu0 %v912
        %v1073 = vpop.f32.mrf.mxu0
        %v1074 = vadd.f32 %v935, %v1073
        %v1075 = vpop.f32.mrf.mxu0
        %1076 = vmatprep.mubr.f32.mxu0 0.0
        %1077 = vmatmul.mubr.f32.gmra.mxu0 %v913
        %v1078 = vpop.f32.mrf.mxu0
        %v1079 = vadd.f32 %v935, %v1078
        %v1080 = vpop.f32.mrf.mxu0
        %1081 = vdwg.mxu0
        %v1082 = vmax.f32 %v1004, 0.0
        %v1083 = vmax.f32 %v1009, 0.0
        %v1084 = vmax.f32 %v1014, 0.0
        %v1085 = vmax.f32 %v1019, 0.0
        %v1086 = vmax.f32 %v1024, 0.0
        %v1087 = vmax.f32 %v1029, 0.0
        %v1088 = vmax.f32 %v1034, 0.0
        %v1089 = vmax.f32 %v1039, 0.0
        %v1090 = vmax.f32 %v1044, 0.0
        %v1091 = vmax.f32 %v1049, 0.0
        %v1092 = vmax.f32 %v1054, 0.0
        %v1093 = vmax.f32 %v1059, 0.0
        %v1094 = vmax.f32 %v1064, 0.0
        %v1095 = vmax.f32 %v1069, 0.0
        %v1096 = vmax.f32 %v1074, 0.0
        %v1097 = vmax.f32 %v1079, 0.0
        %v1098 = vld [vmem:[#allocation8] sm:$0xff]
        %v1099 = vld [vmem:[#allocation8 + $0x8] sm:$0xff]
        %v1100 = vld [vmem:[#allocation8 + $0x10] sm:$0xff]
        %v1101 = vld [vmem:[#allocation8 + $0x18] sm:$0xff]
        %v1102 = vld [vmem:[#allocation8 + $0x20] sm:$0xff]
        %v1103 = vld [vmem:[#allocation8 + $0x28] sm:$0xff]
        %v1104 = vld [vmem:[#allocation8 + $0x30] sm:$0xff]
        %v1105 = vld [vmem:[#allocation8 + $0x38] sm:$0xff]
        %v1106 = vld [vmem:[#allocation8 + $0x40] sm:$0xff]
        %v1107 = vld [vmem:[#allocation8 + $0x48] sm:$0xff]
        %v1108 = vld [vmem:[#allocation8 + $0x50] sm:$0xff]
        %v1109 = vld [vmem:[#allocation8 + $0x58] sm:$0xff]
        %v1110 = vld [vmem:[#allocation8 + $0x60] sm:$0xff]
        %v1111 = vld [vmem:[#allocation8 + $0x68] sm:$0xff]
        %v1112 = vld [vmem:[#allocation8 + $0x70] sm:$0xff]
        %v1113 = vld [vmem:[#allocation8 + $0x78] sm:$0xff]
        %v1114 = vld [vmem:[%s8] sm:$0x1]
        %v1116 = vlaneseq
        %v1117 = vshrl.u32 %v1116, 7
        %v1118 = vsub.s32 0, %v1117
        %v1119 = vrot.slane %v1114, %v1118
        %1121 = vmatprep.subr.mxu0 0.0
        %1122 = vmatpush1.msra.mxu0 %v1113
        %1123 = vmatprep.subr.mxu0 0.0
        %1124 = vmatpush1.msra.mxu0 %v1112
        %1125 = vmatprep.subr.mxu0 0.0
        %1126 = vmatpush1.msra.mxu0 %v1111
        %1127 = vmatprep.subr.mxu0 0.0
        %1128 = vmatpush1.msra.mxu0 %v1110
        %1129 = vmatprep.subr.mxu0 0.0
        %1130 = vmatpush1.msra.mxu0 %v1109
        %1131 = vmatprep.subr.mxu0 0.0
        %1132 = vmatpush1.msra.mxu0 %v1108
        %1133 = vmatprep.subr.mxu0 0.0
        %1134 = vmatpush1.msra.mxu0 %v1107
        %1135 = vmatprep.subr.mxu0 0.0
        %1136 = vmatpush1.msra.mxu0 %v1106
        %1137 = vmatprep.subr.mxu0 0.0
        %1138 = vmatpush1.msra.mxu0 %v1105
        %1139 = vmatprep.subr.mxu0 0.0
        %1140 = vmatpush1.msra.mxu0 %v1104
        %1141 = vmatprep.subr.mxu0 0.0
        %1142 = vmatpush1.msra.mxu0 %v1103
        %1143 = vmatprep.subr.mxu0 0.0
        %1144 = vmatpush1.msra.mxu0 %v1102
        %1145 = vmatprep.subr.mxu0 0.0
        %1146 = vmatpush1.msra.mxu0 %v1101
        %1147 = vmatprep.subr.mxu0 0.0
        %1148 = vmatpush1.msra.mxu0 %v1100
        %1149 = vmatprep.subr.mxu0 0.0
        %1150 = vmatpush1.msra.mxu0 %v1099
        %1151 = vmatprep.subr.mxu0 0.0
        %1152 = vmatpush1.msra.mxu0 %v1098
        %1153 = vmatprep.subr.mxu0 0.0
        %1154 = vmatpush2.msra.mxu0 0.0
        %1155 = vmatprep.subr.mxu0 0.0
        %1156 = vmatpush2.msra.mxu0 0.0
        %1157 = vmatprep.subr.mxu0 0.0
        %1158 = vmatpush2.msra.mxu0 0.0
        %1159 = vmatprep.subr.mxu0 0.0
        %1160 = vmatpush2.msra.mxu0 0.0
        %1161 = vmatprep.subr.mxu0 0.0
        %1162 = vmatpush2.msra.mxu0 0.0
        %1163 = vmatprep.subr.mxu0 0.0
        %1164 = vmatpush2.msra.mxu0 0.0
        %1165 = vmatprep.subr.mxu0 0.0
        %1166 = vmatpush2.msra.mxu0 0.0
        %1167 = vmatprep.subr.mxu0 0.0
        %1168 = vmatpush2.msra.mxu0 0.0
        %1169 = vmatprep.subr.mxu0 0.0
        %1170 = vmatpush2.msra.mxu0 0.0
        %1171 = vmatprep.subr.mxu0 0.0
        %1172 = vmatpush2.msra.mxu0 0.0
        %1173 = vmatprep.subr.mxu0 0.0
        %1174 = vmatpush2.msra.mxu0 0.0
        %1175 = vmatprep.subr.mxu0 0.0
        %1176 = vmatpush2.msra.mxu0 0.0
        %1177 = vmatprep.subr.mxu0 0.0
        %1178 = vmatpush2.msra.mxu0 0.0
        %1179 = vmatprep.subr.mxu0 0.0
        %1180 = vmatpush2.msra.mxu0 0.0
        %1181 = vmatprep.subr.mxu0 0.0
        %1182 = vmatpush2.msra.mxu0 0.0
        %1183 = vmatprep.subr.mxu0 0.0
        %1184 = vmatpush2.msra.mxu0 0.0
        %1185 = vmatprep.mubr.f32.mxu0 0.0
        %1186 = vmatmul.mubr.f32.gmra.mxu0 %v1082
        %v1187 = vpop.f32.mrf.mxu0
        %v1188 = vadd.f32 %v1119, %v1187
        %v1189 = vpop.f32.mrf.mxu0
        %1190 = vmatprep.mubr.f32.mxu0 0.0
        %1191 = vmatmul.mubr.f32.gmra.mxu0 %v1083
        %v1192 = vpop.f32.mrf.mxu0
        %v1193 = vadd.f32 %v1119, %v1192
        %v1194 = vpop.f32.mrf.mxu0
        %1195 = vmatprep.mubr.f32.mxu0 0.0
        %1196 = vmatmul.mubr.f32.gmra.mxu0 %v1084
        %v1197 = vpop.f32.mrf.mxu0
        %v1198 = vadd.f32 %v1119, %v1197
        %v1199 = vpop.f32.mrf.mxu0
        %1200 = vmatprep.mubr.f32.mxu0 0.0
        %1201 = vmatmul.mubr.f32.gmra.mxu0 %v1085
        %v1202 = vpop.f32.mrf.mxu0
        %v1203 = vadd.f32 %v1119, %v1202
        %v1204 = vpop.f32.mrf.mxu0
        %1205 = vmatprep.mubr.f32.mxu0 0.0
        %1206 = vmatmul.mubr.f32.gmra.mxu0 %v1086
        %v1207 = vpop.f32.mrf.mxu0
        %v1208 = vadd.f32 %v1119, %v1207
        %v1209 = vpop.f32.mrf.mxu0
        %1210 = vmatprep.mubr.f32.mxu0 0.0
        %1211 = vmatmul.mubr.f32.gmra.mxu0 %v1087
        %v1212 = vpop.f32.mrf.mxu0
        %v1213 = vadd.f32 %v1119, %v1212
        %v1214 = vpop.f32.mrf.mxu0
        %1215 = vmatprep.mubr.f32.mxu0 0.0
        %1216 = vmatmul.mubr.f32.gmra.mxu0 %v1088
        %v1217 = vpop.f32.mrf.mxu0
        %v1218 = vadd.f32 %v1119, %v1217
        %v1219 = vpop.f32.mrf.mxu0
        %1220 = vmatprep.mubr.f32.mxu0 0.0
        %1221 = vmatmul.mubr.f32.gmra.mxu0 %v1089
        %v1222 = vpop.f32.mrf.mxu0
        %v1223 = vadd.f32 %v1119, %v1222
        %v1224 = vpop.f32.mrf.mxu0
        %1225 = vmatprep.mubr.f32.mxu0 0.0
        %1226 = vmatmul.mubr.f32.gmra.mxu0 %v1090
        %v1227 = vpop.f32.mrf.mxu0
        %v1228 = vadd.f32 %v1119, %v1227
        %v1229 = vpop.f32.mrf.mxu0
        %1230 = vmatprep.mubr.f32.mxu0 0.0
        %1231 = vmatmul.mubr.f32.gmra.mxu0 %v1091
        %v1232 = vpop.f32.mrf.mxu0
        %v1233 = vadd.f32 %v1119, %v1232
        %v1234 = vpop.f32.mrf.mxu0
        %1235 = vmatprep.mubr.f32.mxu0 0.0
        %1236 = vmatmul.mubr.f32.gmra.mxu0 %v1092
        %v1237 = vpop.f32.mrf.mxu0
        %v1238 = vadd.f32 %v1119, %v1237
        %v1239 = vpop.f32.mrf.mxu0
        %1240 = vmatprep.mubr.f32.mxu0 0.0
        %1241 = vmatmul.mubr.f32.gmra.mxu0 %v1093
        %v1242 = vpop.f32.mrf.mxu0
        %v1243 = vadd.f32 %v1119, %v1242
        %v1244 = vpop.f32.mrf.mxu0
        %1245 = vmatprep.mubr.f32.mxu0 0.0
        %1246 = vmatmul.mubr.f32.gmra.mxu0 %v1094
        %v1247 = vpop.f32.mrf.mxu0
        %v1248 = vadd.f32 %v1119, %v1247
        %v1249 = vpop.f32.mrf.mxu0
        %1250 = vmatprep.mubr.f32.mxu0 0.0
        %1251 = vmatmul.mubr.f32.gmra.mxu0 %v1095
        %v1252 = vpop.f32.mrf.mxu0
        %v1253 = vadd.f32 %v1119, %v1252
        %v1254 = vpop.f32.mrf.mxu0
        %1255 = vmatprep.mubr.f32.mxu0 0.0
        %1256 = vmatmul.mubr.f32.gmra.mxu0 %v1096
        %v1257 = vpop.f32.mrf.mxu0
        %v1258 = vadd.f32 %v1119, %v1257
        %v1259 = vpop.f32.mrf.mxu0
        %1260 = vmatprep.mubr.f32.mxu0 0.0
        %1261 = vmatmul.mubr.f32.gmra.mxu0 %v1097
        %v1262 = vpop.f32.mrf.mxu0
        %v1263 = vadd.f32 %v1119, %v1262
        %v1264 = vpop.f32.mrf.mxu0
        %1265 = vdwg.mxu0
        %v1266 = vadd.f32 %v1188, %v898
        %v1267 = vadd.f32 %v1193, %v899
        %v1268 = vadd.f32 %v1198, %v900
        %v1269 = vadd.f32 %v1203, %v901
        %v1270 = vadd.f32 %v1208, %v902
        %v1271 = vadd.f32 %v1213, %v903
        %v1272 = vadd.f32 %v1218, %v904
        %v1273 = vadd.f32 %v1223, %v905
        %v1274 = vadd.f32 %v1228, %v906
        %v1275 = vadd.f32 %v1233, %v907
        %v1276 = vadd.f32 %v1238, %v908
        %v1277 = vadd.f32 %v1243, %v909
        %v1278 = vadd.f32 %v1248, %v910
        %v1279 = vadd.f32 %v1253, %v911
        %v1280 = vadd.f32 %v1258, %v912
        %v1281 = vadd.f32 %v1263, %v913
        %v1282 = vmax.f32 %v1266, 0.0
        %v1283 = vmax.f32 %v1267, 0.0
        %v1284 = vmax.f32 %v1268, 0.0
        %v1285 = vmax.f32 %v1269, 0.0
        %v1286 = vmax.f32 %v1270, 0.0
        %v1287 = vmax.f32 %v1271, 0.0
        %v1288 = vmax.f32 %v1272, 0.0
        %v1289 = vmax.f32 %v1273, 0.0
        %v1290 = vmax.f32 %v1274, 0.0
        %v1291 = vmax.f32 %v1275, 0.0
        %v1292 = vmax.f32 %v1276, 0.0
        %v1293 = vmax.f32 %v1277, 0.0
        %v1294 = vmax.f32 %v1278, 0.0
        %v1295 = vmax.f32 %v1279, 0.0
        %v1296 = vmax.f32 %v1280, 0.0
        %v1297 = vmax.f32 %v1281, 0.0
        %s1298 = scalar_lea.vmem [#allocation6], 128
        %v1299 = vld [vmem:[%s1298] sm:$0xff]
        %v1300 = vld [vmem:[%s1298 + $0x8] sm:$0xff]
        %v1301 = vld [vmem:[%s1298 + $0x10] sm:$0xff]
        %v1302 = vld [vmem:[%s1298 + $0x18] sm:$0xff]
        %v1303 = vld [vmem:[%s1298 + $0x20] sm:$0xff]
        %v1304 = vld [vmem:[%s1298 + $0x28] sm:$0xff]
        %v1305 = vld [vmem:[%s1298 + $0x30] sm:$0xff]
        %v1306 = vld [vmem:[%s1298 + $0x38] sm:$0xff]
        %v1307 = vld [vmem:[%s1298 + $0x40] sm:$0xff]
        %v1308 = vld [vmem:[%s1298 + $0x48] sm:$0xff]
        %v1309 = vld [vmem:[%s1298 + $0x50] sm:$0xff]
        %v1310 = vld [vmem:[%s1298 + $0x58] sm:$0xff]
        %v1311 = vld [vmem:[%s1298 + $0x60] sm:$0xff]
        %v1312 = vld [vmem:[%s1298 + $0x68] sm:$0xff]
        %v1313 = vld [vmem:[%s1298 + $0x70] sm:$0xff]
        %v1314 = vld [vmem:[%s1298 + $0x78] sm:$0xff]
        %s1315 = scalar_lea.vmem %s6, 1
        %v1316 = vld [vmem:[%s1315] sm:$0x1]
        %v1318 = vlaneseq
        %v1319 = vshrl.u32 %v1318, 7
        %v1320 = vsub.s32 0, %v1319
        %v1321 = vrot.slane %v1316, %v1320
        %1323 = vmatprep.subr.mxu0 0.0
        %1324 = vmatpush1.msra.mxu0 %v1314
        %1325 = vmatprep.subr.mxu0 0.0
        %1326 = vmatpush1.msra.mxu0 %v1313
        %1327 = vmatprep.subr.mxu0 0.0
        %1328 = vmatpush1.msra.mxu0 %v1312
        %1329 = vmatprep.subr.mxu0 0.0
        %1330 = vmatpush1.msra.mxu0 %v1311
        %1331 = vmatprep.subr.mxu0 0.0
        %1332 = vmatpush1.msra.mxu0 %v1310
        %1333 = vmatprep.subr.mxu0 0.0
        %1334 = vmatpush1.msra.mxu0 %v1309
        %1335 = vmatprep.subr.mxu0 0.0
        %1336 = vmatpush1.msra.mxu0 %v1308
        %1337 = vmatprep.subr.mxu0 0.0
        %1338 = vmatpush1.msra.mxu0 %v1307
        %1339 = vmatprep.subr.mxu0 0.0
        %1340 = vmatpush1.msra.mxu0 %v1306
        %1341 = vmatprep.subr.mxu0 0.0
        %1342 = vmatpush1.msra.mxu0 %v1305
        %1343 = vmatprep.subr.mxu0 0.0
        %1344 = vmatpush1.msra.mxu0 %v1304
        %1345 = vmatprep.subr.mxu0 0.0
        %1346 = vmatpush1.msra.mxu0 %v1303
        %1347 = vmatprep.subr.mxu0 0.0
        %1348 = vmatpush1.msra.mxu0 %v1302
        %1349 = vmatprep.subr.mxu0 0.0
        %1350 = vmatpush1.msra.mxu0 %v1301
        %1351 = vmatprep.subr.mxu0 0.0
        %1352 = vmatpush1.msra.mxu0 %v1300
        %1353 = vmatprep.subr.mxu0 0.0
        %1354 = vmatpush1.msra.mxu0 %v1299
        %1355 = vmatprep.subr.mxu0 0.0
        %1356 = vmatpush2.msra.mxu0 0.0
        %1357 = vmatprep.subr.mxu0 0.0
        %1358 = vmatpush2.msra.mxu0 0.0
        %1359 = vmatprep.subr.mxu0 0.0
        %1360 = vmatpush2.msra.mxu0 0.0
        %1361 = vmatprep.subr.mxu0 0.0
        %1362 = vmatpush2.msra.mxu0 0.0
        %1363 = vmatprep.subr.mxu0 0.0
        %1364 = vmatpush2.msra.mxu0 0.0
        %1365 = vmatprep.subr.mxu0 0.0
        %1366 = vmatpush2.msra.mxu0 0.0
        %1367 = vmatprep.subr.mxu0 0.0
        %1368 = vmatpush2.msra.mxu0 0.0
        %1369 = vmatprep.subr.mxu0 0.0
        %1370 = vmatpush2.msra.mxu0 0.0
        %1371 = vmatprep.subr.mxu0 0.0
        %1372 = vmatpush2.msra.mxu0 0.0
        %1373 = vmatprep.subr.mxu0 0.0
        %1374 = vmatpush2.msra.mxu0 0.0
        %1375 = vmatprep.subr.mxu0 0.0
        %1376 = vmatpush2.msra.mxu0 0.0
        %1377 = vmatprep.subr.mxu0 0.0
        %1378 = vmatpush2.msra.mxu0 0.0
        %1379 = vmatprep.subr.mxu0 0.0
        %1380 = vmatpush2.msra.mxu0 0.0
        %1381 = vmatprep.subr.mxu0 0.0
        %1382 = vmatpush2.msra.mxu0 0.0
        %1383 = vmatprep.subr.mxu0 0.0
        %1384 = vmatpush2.msra.mxu0 0.0
        %1385 = vmatprep.subr.mxu0 0.0
        %1386 = vmatpush2.msra.mxu0 0.0
        %1387 = vmatprep.mubr.f32.mxu0 0.0
        %1388 = vmatmul.mubr.f32.gmra.mxu0 %v1282
        %v1389 = vpop.f32.mrf.mxu0
        %v1390 = vadd.f32 %v1321, %v1389
        %v1391 = vpop.f32.mrf.mxu0
        %1392 = vmatprep.mubr.f32.mxu0 0.0
        %1393 = vmatmul.mubr.f32.gmra.mxu0 %v1283
        %v1394 = vpop.f32.mrf.mxu0
        %v1395 = vadd.f32 %v1321, %v1394
        %v1396 = vpop.f32.mrf.mxu0
        %1397 = vmatprep.mubr.f32.mxu0 0.0
        %1398 = vmatmul.mubr.f32.gmra.mxu0 %v1284
        %v1399 = vpop.f32.mrf.mxu0
        %v1400 = vadd.f32 %v1321, %v1399
        %v1401 = vpop.f32.mrf.mxu0
        %1402 = vmatprep.mubr.f32.mxu0 0.0
        %1403 = vmatmul.mubr.f32.gmra.mxu0 %v1285
        %v1404 = vpop.f32.mrf.mxu0
        %v1405 = vadd.f32 %v1321, %v1404
        %v1406 = vpop.f32.mrf.mxu0
        %1407 = vmatprep.mubr.f32.mxu0 0.0
        %1408 = vmatmul.mubr.f32.gmra.mxu0 %v1286
        %v1409 = vpop.f32.mrf.mxu0
        %v1410 = vadd.f32 %v1321, %v1409
        %v1411 = vpop.f32.mrf.mxu0
        %1412 = vmatprep.mubr.f32.mxu0 0.0
        %1413 = vmatmul.mubr.f32.gmra.mxu0 %v1287
        %v1414 = vpop.f32.mrf.mxu0
        %v1415 = vadd.f32 %v1321, %v1414
        %v1416 = vpop.f32.mrf.mxu0
        %1417 = vmatprep.mubr.f32.mxu0 0.0
        %1418 = vmatmul.mubr.f32.gmra.mxu0 %v1288
        %v1419 = vpop.f32.mrf.mxu0
        %v1420 = vadd.f32 %v1321, %v1419
        %v1421 = vpop.f32.mrf.mxu0
        %1422 = vmatprep.mubr.f32.mxu0 0.0
        %1423 = vmatmul.mubr.f32.gmra.mxu0 %v1289
        %v1424 = vpop.f32.mrf.mxu0
        %v1425 = vadd.f32 %v1321, %v1424
        %v1426 = vpop.f32.mrf.mxu0
        %1427 = vmatprep.mubr.f32.mxu0 0.0
        %1428 = vmatmul.mubr.f32.gmra.mxu0 %v1290
        %v1429 = vpop.f32.mrf.mxu0
        %v1430 = vadd.f32 %v1321, %v1429
        %v1431 = vpop.f32.mrf.mxu0
        %1432 = vmatprep.mubr.f32.mxu0 0.0
        %1433 = vmatmul.mubr.f32.gmra.mxu0 %v1291
        %v1434 = vpop.f32.mrf.mxu0
        %v1435 = vadd.f32 %v1321, %v1434
        %v1436 = vpop.f32.mrf.mxu0
        %1437 = vmatprep.mubr.f32.mxu0 0.0
        %1438 = vmatmul.mubr.f32.gmra.mxu0 %v1292
        %v1439 = vpop.f32.mrf.mxu0
        %v1440 = vadd.f32 %v1321, %v1439
        %v1441 = vpop.f32.mrf.mxu0
        %1442 = vmatprep.mubr.f32.mxu0 0.0
        %1443 = vmatmul.mubr.f32.gmra.mxu0 %v1293
        %v1444 = vpop.f32.mrf.mxu0
        %v1445 = vadd.f32 %v1321, %v1444
        %v1446 = vpop.f32.mrf.mxu0
        %1447 = vmatprep.mubr.f32.mxu0 0.0
        %1448 = vmatmul.mubr.f32.gmra.mxu0 %v1294
        %v1449 = vpop.f32.mrf.mxu0
        %v1450 = vadd.f32 %v1321, %v1449
        %v1451 = vpop.f32.mrf.mxu0
        %1452 = vmatprep.mubr.f32.mxu0 0.0
        %1453 = vmatmul.mubr.f32.gmra.mxu0 %v1295
        %v1454 = vpop.f32.mrf.mxu0
        %v1455 = vadd.f32 %v1321, %v1454
        %v1456 = vpop.f32.mrf.mxu0
        %1457 = vmatprep.mubr.f32.mxu0 0.0
        %1458 = vmatmul.mubr.f32.gmra.mxu0 %v1296
        %v1459 = vpop.f32.mrf.mxu0
        %v1460 = vadd.f32 %v1321, %v1459
        %v1461 = vpop.f32.mrf.mxu0
        %1462 = vmatprep.mubr.f32.mxu0 0.0
        %1463 = vmatmul.mubr.f32.gmra.mxu0 %v1297
        %v1464 = vpop.f32.mrf.mxu0
        %v1465 = vadd.f32 %v1321, %v1464
        %v1466 = vpop.f32.mrf.mxu0
        %1467 = vdwg.mxu0
        %v1468 = vmax.f32 %v1390, 0.0
        %v1469 = vmax.f32 %v1395, 0.0
        %v1470 = vmax.f32 %v1400, 0.0
        %v1471 = vmax.f32 %v1405, 0.0
        %v1472 = vmax.f32 %v1410, 0.0
        %v1473 = vmax.f32 %v1415, 0.0
        %v1474 = vmax.f32 %v1420, 0.0
        %v1475 = vmax.f32 %v1425, 0.0
        %v1476 = vmax.f32 %v1430, 0.0
        %v1477 = vmax.f32 %v1435, 0.0
        %v1478 = vmax.f32 %v1440, 0.0
        %v1479 = vmax.f32 %v1445, 0.0
        %v1480 = vmax.f32 %v1450, 0.0
        %v1481 = vmax.f32 %v1455, 0.0
        %v1482 = vmax.f32 %v1460, 0.0
        %v1483 = vmax.f32 %v1465, 0.0
        %s1484 = scalar_lea.vmem [#allocation8], 128
        %v1485 = vld [vmem:[%s1484] sm:$0xff]
        %v1486 = vld [vmem:[%s1484 + $0x8] sm:$0xff]
        %v1487 = vld [vmem:[%s1484 + $0x10] sm:$0xff]
        %v1488 = vld [vmem:[%s1484 + $0x18] sm:$0xff]
        %v1489 = vld [vmem:[%s1484 + $0x20] sm:$0xff]
        %v1490 = vld [vmem:[%s1484 + $0x28] sm:$0xff]
        %v1491 = vld [vmem:[%s1484 + $0x30] sm:$0xff]
        %v1492 = vld [vmem:[%s1484 + $0x38] sm:$0xff]
        %v1493 = vld [vmem:[%s1484 + $0x40] sm:$0xff]
        %v1494 = vld [vmem:[%s1484 + $0x48] sm:$0xff]
        %v1495 = vld [vmem:[%s1484 + $0x50] sm:$0xff]
        %v1496 = vld [vmem:[%s1484 + $0x58] sm:$0xff]
        %v1497 = vld [vmem:[%s1484 + $0x60] sm:$0xff]
        %v1498 = vld [vmem:[%s1484 + $0x68] sm:$0xff]
        %v1499 = vld [vmem:[%s1484 + $0x70] sm:$0xff]
        %v1500 = vld [vmem:[%s1484 + $0x78] sm:$0xff]
        %s1501 = scalar_lea.vmem %s8, 1
        %v1502 = vld [vmem:[%s1501] sm:$0x1]
        %v1504 = vlaneseq
        %v1505 = vshrl.u32 %v1504, 7
        %v1506 = vsub.s32 0, %v1505
        %v1507 = vrot.slane %v1502, %v1506
        %1509 = vmatprep.subr.mxu0 0.0
        %1510 = vmatpush1.msra.mxu0 %v1500
        %1511 = vmatprep.subr.mxu0 0.0
        %1512 = vmatpush1.msra.mxu0 %v1499
        %1513 = vmatprep.subr.mxu0 0.0
        %1514 = vmatpush1.msra.mxu0 %v1498
        %1515 = vmatprep.subr.mxu0 0.0
        %1516 = vmatpush1.msra.mxu0 %v1497
        %1517 = vmatprep.subr.mxu0 0.0
        %1518 = vmatpush1.msra.mxu0 %v1496
        %1519 = vmatprep.subr.mxu0 0.0
        %1520 = vmatpush1.msra.mxu0 %v1495
        %1521 = vmatprep.subr.mxu0 0.0
        %1522 = vmatpush1.msra.mxu0 %v1494
        %1523 = vmatprep.subr.mxu0 0.0
        %1524 = vmatpush1.msra.mxu0 %v1493
        %1525 = vmatprep.subr.mxu0 0.0
        %1526 = vmatpush1.msra.mxu0 %v1492
        %1527 = vmatprep.subr.mxu0 0.0
        %1528 = vmatpush1.msra.mxu0 %v1491
        %1529 = vmatprep.subr.mxu0 0.0
        %1530 = vmatpush1.msra.mxu0 %v1490
        %1531 = vmatprep.subr.mxu0 0.0
        %1532 = vmatpush1.msra.mxu0 %v1489
        %1533 = vmatprep.subr.mxu0 0.0
        %1534 = vmatpush1.msra.mxu0 %v1488
        %1535 = vmatprep.subr.mxu0 0.0
        %1536 = vmatpush1.msra.mxu0 %v1487
        %1537 = vmatprep.subr.mxu0 0.0
        %1538 = vmatpush1.msra.mxu0 %v1486
        %1539 = vmatprep.subr.mxu0 0.0
        %1540 = vmatpush1.msra.mxu0 %v1485
        %1541 = vmatprep.subr.mxu0 0.0
        %1542 = vmatpush2.msra.mxu0 0.0
        %1543 = vmatprep.subr.mxu0 0.0
        %1544 = vmatpush2.msra.mxu0 0.0
        %1545 = vmatprep.subr.mxu0 0.0
        %1546 = vmatpush2.msra.mxu0 0.0
        %1547 = vmatprep.subr.mxu0 0.0
        %1548 = vmatpush2.msra.mxu0 0.0
        %1549 = vmatprep.subr.mxu0 0.0
        %1550 = vmatpush2.msra.mxu0 0.0
        %1551 = vmatprep.subr.mxu0 0.0
        %1552 = vmatpush2.msra.mxu0 0.0
        %1553 = vmatprep.subr.mxu0 0.0
        %1554 = vmatpush2.msra.mxu0 0.0
        %1555 = vmatprep.subr.mxu0 0.0
        %1556 = vmatpush2.msra.mxu0 0.0
        %1557 = vmatprep.subr.mxu0 0.0
        %1558 = vmatpush2.msra.mxu0 0.0
        %1559 = vmatprep.subr.mxu0 0.0
        %1560 = vmatpush2.msra.mxu0 0.0
        %1561 = vmatprep.subr.mxu0 0.0
        %1562 = vmatpush2.msra.mxu0 0.0
        %1563 = vmatprep.subr.mxu0 0.0
        %1564 = vmatpush2.msra.mxu0 0.0
        %1565 = vmatprep.subr.mxu0 0.0
        %1566 = vmatpush2.msra.mxu0 0.0
        %1567 = vmatprep.subr.mxu0 0.0
        %1568 = vmatpush2.msra.mxu0 0.0
        %1569 = vmatprep.subr.mxu0 0.0
        %1570 = vmatpush2.msra.mxu0 0.0
        %1571 = vmatprep.subr.mxu0 0.0
        %1572 = vmatpush2.msra.mxu0 0.0
        %1573 = vmatprep.mubr.f32.mxu0 0.0
        %1574 = vmatmul.mubr.f32.gmra.mxu0 %v1468
        %v1575 = vpop.f32.mrf.mxu0
        %v1576 = vadd.f32 %v1507, %v1575
        %v1577 = vpop.f32.mrf.mxu0
        %1578 = vmatprep.mubr.f32.mxu0 0.0
        %1579 = vmatmul.mubr.f32.gmra.mxu0 %v1469
        %v1580 = vpop.f32.mrf.mxu0
        %v1581 = vadd.f32 %v1507, %v1580
        %v1582 = vpop.f32.mrf.mxu0
        %1583 = vmatprep.mubr.f32.mxu0 0.0
        %1584 = vmatmul.mubr.f32.gmra.mxu0 %v1470
        %v1585 = vpop.f32.mrf.mxu0
        %v1586 = vadd.f32 %v1507, %v1585
        %v1587 = vpop.f32.mrf.mxu0
        %1588 = vmatprep.mubr.f32.mxu0 0.0
        %1589 = vmatmul.mubr.f32.gmra.mxu0 %v1471
        %v1590 = vpop.f32.mrf.mxu0
        %v1591 = vadd.f32 %v1507, %v1590
        %v1592 = vpop.f32.mrf.mxu0
        %1593 = vmatprep.mubr.f32.mxu0 0.0
        %1594 = vmatmul.mubr.f32.gmra.mxu0 %v1472
        %v1595 = vpop.f32.mrf.mxu0
        %v1596 = vadd.f32 %v1507, %v1595
        %v1597 = vpop.f32.mrf.mxu0
        %1598 = vmatprep.mubr.f32.mxu0 0.0
        %1599 = vmatmul.mubr.f32.gmra.mxu0 %v1473
        %v1600 = vpop.f32.mrf.mxu0
        %v1601 = vadd.f32 %v1507, %v1600
        %v1602 = vpop.f32.mrf.mxu0
        %1603 = vmatprep.mubr.f32.mxu0 0.0
        %1604 = vmatmul.mubr.f32.gmra.mxu0 %v1474
        %v1605 = vpop.f32.mrf.mxu0
        %v1606 = vadd.f32 %v1507, %v1605
        %v1607 = vpop.f32.mrf.mxu0
        %1608 = vmatprep.mubr.f32.mxu0 0.0
        %1609 = vmatmul.mubr.f32.gmra.mxu0 %v1475
        %v1610 = vpop.f32.mrf.mxu0
        %v1611 = vadd.f32 %v1507, %v1610
        %v1612 = vpop.f32.mrf.mxu0
        %1613 = vmatprep.mubr.f32.mxu0 0.0
        %1614 = vmatmul.mubr.f32.gmra.mxu0 %v1476
        %v1615 = vpop.f32.mrf.mxu0
        %v1616 = vadd.f32 %v1507, %v1615
        %v1617 = vpop.f32.mrf.mxu0
        %1618 = vmatprep.mubr.f32.mxu0 0.0
        %1619 = vmatmul.mubr.f32.gmra.mxu0 %v1477
        %v1620 = vpop.f32.mrf.mxu0
        %v1621 = vadd.f32 %v1507, %v1620
        %v1622 = vpop.f32.mrf.mxu0
        %1623 = vmatprep.mubr.f32.mxu0 0.0
        %1624 = vmatmul.mubr.f32.gmra.mxu0 %v1478
        %v1625 = vpop.f32.mrf.mxu0
        %v1626 = vadd.f32 %v1507, %v1625
        %v1627 = vpop.f32.mrf.mxu0
        %1628 = vmatprep.mubr.f32.mxu0 0.0
        %1629 = vmatmul.mubr.f32.gmra.mxu0 %v1479
        %v1630 = vpop.f32.mrf.mxu0
        %v1631 = vadd.f32 %v1507, %v1630
        %v1632 = vpop.f32.mrf.mxu0
        %1633 = vmatprep.mubr.f32.mxu0 0.0
        %1634 = vmatmul.mubr.f32.gmra.mxu0 %v1480
        %v1635 = vpop.f32.mrf.mxu0
        %v1636 = vadd.f32 %v1507, %v1635
        %v1637 = vpop.f32.mrf.mxu0
        %1638 = vmatprep.mubr.f32.mxu0 0.0
        %1639 = vmatmul.mubr.f32.gmra.mxu0 %v1481
        %v1640 = vpop.f32.mrf.mxu0
        %v1641 = vadd.f32 %v1507, %v1640
        %v1642 = vpop.f32.mrf.mxu0
        %1643 = vmatprep.mubr.f32.mxu0 0.0
        %1644 = vmatmul.mubr.f32.gmra.mxu0 %v1482
        %v1645 = vpop.f32.mrf.mxu0
        %v1646 = vadd.f32 %v1507, %v1645
        %v1647 = vpop.f32.mrf.mxu0
        %1648 = vmatprep.mubr.f32.mxu0 0.0
        %1649 = vmatmul.mubr.f32.gmra.mxu0 %v1483
        %v1650 = vpop.f32.mrf.mxu0
        %v1651 = vadd.f32 %v1507, %v1650
        %v1652 = vpop.f32.mrf.mxu0
        %1653 = vdwg.mxu0
        %v1654 = vadd.f32 %v1576, %v1282
        %v1655 = vadd.f32 %v1581, %v1283
        %v1656 = vadd.f32 %v1586, %v1284
        %v1657 = vadd.f32 %v1591, %v1285
        %v1658 = vadd.f32 %v1596, %v1286
        %v1659 = vadd.f32 %v1601, %v1287
        %v1660 = vadd.f32 %v1606, %v1288
        %v1661 = vadd.f32 %v1611, %v1289
        %v1662 = vadd.f32 %v1616, %v1290
        %v1663 = vadd.f32 %v1621, %v1291
        %v1664 = vadd.f32 %v1626, %v1292
        %v1665 = vadd.f32 %v1631, %v1293
        %v1666 = vadd.f32 %v1636, %v1294
        %v1667 = vadd.f32 %v1641, %v1295
        %v1668 = vadd.f32 %v1646, %v1296
        %v1669 = vadd.f32 %v1651, %v1297
        %v1670 = vmax.f32 %v1654, 0.0
        %v1671 = vmax.f32 %v1655, 0.0
        %v1672 = vmax.f32 %v1656, 0.0
        %v1673 = vmax.f32 %v1657, 0.0
        %v1674 = vmax.f32 %v1658, 0.0
        %v1675 = vmax.f32 %v1659, 0.0
        %v1676 = vmax.f32 %v1660, 0.0
        %v1677 = vmax.f32 %v1661, 0.0
        %v1678 = vmax.f32 %v1662, 0.0
        %v1679 = vmax.f32 %v1663, 0.0
        %v1680 = vmax.f32 %v1664, 0.0
        %v1681 = vmax.f32 %v1665, 0.0
        %v1682 = vmax.f32 %v1666, 0.0
        %v1683 = vmax.f32 %v1667, 0.0
        %v1684 = vmax.f32 %v1668, 0.0
        %v1685 = vmax.f32 %v1669, 0.0
        %v1686 = vld [vmem:[%s9] sm:$0x1]
        %v1687 = vld [vmem:[#allocation2] sm:$0x1]
        %1689 = vset.pattern.permute.xlu0 0
        %1690 = vperm.xlu0 %1689, %v1687
        %v1691 = vpop.permute.xlu0 %1690
        %v1693 = vlaneseq
        %v1694 = vshrl.u32 %v1693, 7
        %v1695 = vsub.s32 0, %v1694
        %v1696 = vrot.slane %v1691, %v1695
        %1697 = vmatprep.subr.mxu0 0.0
        %1698 = vmatpush1.xpose.msra.mxu0 %v1685
        %1699 = vmatprep.subr.mxu0 0.0
        %1700 = vmatpush1.xpose.msra.mxu0 %v1684
        %1701 = vmatprep.subr.mxu0 0.0
        %1702 = vmatpush1.xpose.msra.mxu0 %v1683
        %1703 = vmatprep.subr.mxu0 0.0
        %1704 = vmatpush1.xpose.msra.mxu0 %v1682
        %1705 = vmatprep.subr.mxu0 0.0
        %1706 = vmatpush1.xpose.msra.mxu0 %v1681
        %1707 = vmatprep.subr.mxu0 0.0
        %1708 = vmatpush1.xpose.msra.mxu0 %v1680
        %1709 = vmatprep.subr.mxu0 0.0
        %1710 = vmatpush1.xpose.msra.mxu0 %v1679
        %1711 = vmatprep.subr.mxu0 0.0
        %1712 = vmatpush1.xpose.msra.mxu0 %v1678
        %1713 = vmatprep.subr.mxu0 0.0
        %1714 = vmatpush1.xpose.msra.mxu0 %v1677
        %1715 = vmatprep.subr.mxu0 0.0
        %1716 = vmatpush1.xpose.msra.mxu0 %v1676
        %1717 = vmatprep.subr.mxu0 0.0
        %1718 = vmatpush1.xpose.msra.mxu0 %v1675
        %1719 = vmatprep.subr.mxu0 0.0
        %1720 = vmatpush1.xpose.msra.mxu0 %v1674
        %1721 = vmatprep.subr.mxu0 0.0
        %1722 = vmatpush1.xpose.msra.mxu0 %v1673
        %1723 = vmatprep.subr.mxu0 0.0
        %1724 = vmatpush1.xpose.msra.mxu0 %v1672
        %1725 = vmatprep.subr.mxu0 0.0
        %1726 = vmatpush1.xpose.msra.mxu0 %v1671
        %1727 = vmatprep.subr.mxu0 0.0
        %1728 = vmatpush1.xpose.msra.mxu0 %v1670
        %1729 = vmatprep.subr.mxu0 0.0
        %1730 = vmatpush2.xpose.msra.mxu0 0.0
        %1731 = vmatprep.subr.mxu0 0.0
        %1732 = vmatpush2.xpose.msra.mxu0 0.0
        %1733 = vmatprep.subr.mxu0 0.0
        %1734 = vmatpush2.xpose.msra.mxu0 0.0
        %1735 = vmatprep.subr.mxu0 0.0
        %1736 = vmatpush2.xpose.msra.mxu0 0.0
        %1737 = vmatprep.subr.mxu0 0.0
        %1738 = vmatpush2.xpose.msra.mxu0 0.0
        %1739 = vmatprep.subr.mxu0 0.0
        %1740 = vmatpush2.xpose.msra.mxu0 0.0
        %1741 = vmatprep.subr.mxu0 0.0
        %1742 = vmatpush2.xpose.msra.mxu0 0.0
        %1743 = vmatprep.subr.mxu0 0.0
        %1744 = vmatpush2.xpose.msra.mxu0 0.0
        %1745 = vmatprep.subr.mxu0 0.0
        %1746 = vmatpush2.xpose.msra.mxu0 0.0
        %1747 = vmatprep.subr.mxu0 0.0
        %1748 = vmatpush2.xpose.msra.mxu0 0.0
        %1749 = vmatprep.subr.mxu0 0.0
        %1750 = vmatpush2.xpose.msra.mxu0 0.0
        %1751 = vmatprep.subr.mxu0 0.0
        %1752 = vmatpush2.xpose.msra.mxu0 0.0
        %1753 = vmatprep.subr.mxu0 0.0
        %1754 = vmatpush2.xpose.msra.mxu0 0.0
        %1755 = vmatprep.subr.mxu0 0.0
        %1756 = vmatpush2.xpose.msra.mxu0 0.0
        %1757 = vmatprep.subr.mxu0 0.0
        %1758 = vmatpush2.xpose.msra.mxu0 0.0
        %1759 = vmatprep.subr.mxu0 0.0
        %1760 = vmatpush2.xpose.msra.mxu0 0.0
        %1761 = vmatprep.mubr.f32.mxu0 0.0
        %1762 = vmatmul.mubr.f32.gmra.mxu0 %v1686
        %v1763 = vpop.f32.mrf.mxu0
        %v1764 = vadd.f32 %v1696, %v1763
        %v1765 = vpop.f32.mrf.mxu0
        %1766 = vdwg.mxu0
        %1767 = vst [vmem:[%s425] sm:$0x1] %v1764
        %s1768 = sand.u32 %s273, 1
        %s1769 = scalar_lea.sflag [#allocation5], %s1768
        %s1770 = sand.u32 %s273, 1
        %s1771 = scalar_lea.vmem [#allocation9], %s1770
        // Predicated region
        $region77: #{tpu_custom_call.1} parent=63 // pred_check
          %p1772 = pneg %p283
        $region78: #{tpu_custom_call.1} parent=63 // pred_check_branch
          %1774 = sbr.rel (%p1772) target = $region80
        $region79: #{tpu_custom_call.1} parent=63 // pred_region
          %s1776 = ssub.s32 16, 16
          %1777 = vsyncadd %s1769, %s1776
          %s1778 = smul.addr %s29, 16
          %s1779 = scalar_lea.hbm %s11, %s1778
          %s1781 = sshll.u32 %s1771, 4
          %s1782 = int_to_ptr.vmem [resolvable:$true] %s1781
          %1784 = dma.vmem_to_hbm [thread:$0]  %s1782, 16, %s1779, %s1769
        $region80: #{tpu_custom_call.1} parent=63 // pred_fallthru
          _
      $region64: #{tpu_custom_call.1} parent=5 // pred_fallthru
        _
      %p1785 = scmp.le.s32.totalorder 2, %s24
      // Predicated region
      $region81: #{tpu_custom_call.1} parent=5 // pred_check
        %p1786 = pneg %p1785
      $region82: #{tpu_custom_call.1} parent=5 // pred_check_branch
        %1788 = sbr.rel (%p1786) target = $region84
      $region83: #{tpu_custom_call.1} parent=5 // pred_region
        %s1789 = ssub.s32 %s24, 2
        // Predicated region
        $region85: #{tpu_custom_call.1} parent=83 // pred_check
          %p1790 = pneg %p289
        $region86: #{tpu_custom_call.1} parent=83 // pred_check_branch
          %1792 = sbr.rel (%p1790) target = $region88
        $region87: #{tpu_custom_call.1} parent=83 // pred_region
          %s1793 = sand.u32 %s274, 1
          %s1794 = scalar_lea.sflag [#allocation5], %s1793
          %s1795 = sand.u32 %s274, 1
          %s1796 = scalar_lea.vmem [#allocation9], %s1795
          %1797 = dma.done %s1794, 16
        $region88: #{tpu_custom_call.1} parent=83 // pred_fallthru
          _
      $region84: #{tpu_custom_call.1} parent=5 // pred_fallthru
        _
    $region6: #{tpu_custom_call.1} parent=1 // loop_footer
      %s28 = sadd.s32 1, %s24
    $region7: #{tpu_custom_call.1} parent=1 // loop_footer_branch
      %23 = sbr.rel target = $region3
    $region8: #{tpu_custom_call.1} parent=1 // loop_exit
      _
    %1798 = vsyncpa [#allocation4], 1
    %s1799 = scalar_lea.sflag [#allocation4], 1
    %1800 = vsyncpa %s1799, 1
    %1801 = vsyncpa [#allocation7], 1
    %1802 = vsyncpa [#allocation5], 1
    %s1803 = scalar_lea.sflag [#allocation5], 1
    %1804 = vsyncpa %s1803, 1

</llo_original>
